<compile_context>
chip_gen: v6e
topology: v6e:2x2x1
jax: 0.10.0
libtpu: 0.0.40
codegen_flags: <defaults>
</compile_context>

<pallas_src>
import math
import functools

import jax
import jax.numpy as jnp
from jax.experimental import pallas as pl
from jax.experimental.pallas import tpu as pltpu


# ----------------------------------------------------------------------------
# BlockSpec helpers (all grids here are 1-D)
# ----------------------------------------------------------------------------
def _full_spec(shape):
    zeros = (0,) * len(shape)
    return pl.BlockSpec(shape, lambda i, z=zeros: z)


# ----------------------------------------------------------------------------
# In-kernel building blocks (operate on jnp values, f32 math)
# ----------------------------------------------------------------------------
def _ln(x, g, b, eps=1e-5):
    mu = jnp.mean(x, axis=-1, keepdims=True)
    xc = x - mu
    var = jnp.mean(xc * xc, axis=-1, keepdims=True)
    return xc * jax.lax.rsqrt(var + eps) * g + b


def _mha_heads(q, kv, w_o, b_o, nhead, scale):
    """q: (Lq, D) projected queries, kv: (Lk, 2D) projected keys||values.

    Per-head softmax attention; the output projection is folded into the head
    loop (sum_h o_h @ w_o[h*hd:(h+1)*hd, :]) so no head-concat / transpose /
    scratch is needed.
    """
    D = q.shape[-1]
    hd = D // nhead
    out = None
    for h in range(nhead):
        qs = q[:, h * hd:(h + 1) * hd] * scale                 # (Lq, hd)
        ks = kv[:, h * hd:(h + 1) * hd]                        # (Lk, hd)
        vs = kv[:, D + h * hd:D + (h + 1) * hd]                # (Lk, hd)
        s = jax.lax.dot_general(qs, ks, (((1,), (1,)), ((), ())),
                                preferred_element_type=jnp.float32)   # (Lq, Lk)
        m = jnp.max(s, axis=-1, keepdims=True)
        p = jnp.exp(s - m)
        p = p * pl.reciprocal(jnp.sum(p, axis=-1, keepdims=True), approx=True)
        o_h = jnp.dot(p, vs, preferred_element_type=jnp.float32)      # (Lq, hd)
        ph = jnp.dot(o_h, w_o[h * hd:(h + 1) * hd, :],
                     preferred_element_type=jnp.float32)              # (Lq, D)
        out = ph if out is None else out + ph
    return out + b_o


def _ffn(x, w1, b1, w2, b2):
    h = jnp.dot(x, w1, preferred_element_type=jnp.float32) + b1
    h = jnp.maximum(h, 0.0)                                    # relu
    return jnp.dot(h, w2, preferred_element_type=jnp.float32) + b2


# ----------------------------------------------------------------------------
# Fused encoder layer kernel (one grid step == one batch element)
# ----------------------------------------------------------------------------
def _enc_layer_kernel(x_ref, wqkv_ref, bqkv_ref, wo_ref, bo_ref,
                      ln1g_ref, ln1b_ref, w1_ref, b1_ref, w2_ref, b2_ref,
                      ln2g_ref, ln2b_ref, o_ref, *, nhead, scale):
    x = x_ref[0]                                               # (S, D)
    D = x.shape[-1]
    qkv = jnp.dot(x, wqkv_ref[...],
                  preferred_element_type=jnp.float32) + bqkv_ref[...]   # (S, 3D)
    a = _mha_heads(qkv[:, :D], qkv[:, D:], wo_ref[...], bo_ref[...], nhead, scale)
    x1 = _ln(x + a, ln1g_ref[...], ln1b_ref[...])
    f = _ffn(x1, w1_ref[...], b1_ref[...], w2_ref[...], b2_ref[...])
    o_ref[0] = _ln(x1 + f, ln2g_ref[...], ln2b_ref[...])


def encoder_layer(x, p, nhead):
    """x: (B, S, D) -> (B, S, D)."""
    B, S, D = x.shape
    scale = 1.0 / math.sqrt(D // nhead)
    sa = p["self_attn"]
    batch_spec = pl.BlockSpec((1, S, D), lambda b: (b, 0, 0))
    weights = (sa["w_qkv"], sa["b_qkv"], sa["w_o"], sa["b_o"],
               p["ln1_g"], p["ln1_b"], p["w1"], p["b1"], p["w2"], p["b2"],
               p["ln2_g"], p["ln2_b"])
    return pl.pallas_call(
        functools.partial(_enc_layer_kernel, nhead=nhead, scale=scale),
        grid=(B,),
        out_shape=jax.ShapeDtypeStruct((B, S, D), jnp.float32),
        in_specs=[batch_spec] + [_full_spec(w.shape) for w in weights],
        out_specs=batch_spec,
        compiler_params=pltpu.CompilerParams(dimension_semantics=("parallel",)),
    )(x, *weights)


# ----------------------------------------------------------------------------
# Fused decoder layer kernel (self-attn + cross-attn + FFN, post-norm)
# ----------------------------------------------------------------------------
def _dec_layer_kernel(x_ref, mem_ref,
                      sa_wqkv, sa_bqkv, sa_wo, sa_bo, ln1g_ref, ln1b_ref,
                      ca_wq, ca_bq, ca_wkv, ca_bkv, ca_wo, ca_bo,
                      ln2g_ref, ln2b_ref,
                      w1_ref, b1_ref, w2_ref, b2_ref, ln3g_ref, ln3b_ref,
                      o_ref, *, nhead, scale):
    x = x_ref[0]                                               # (St, D)
    mem = mem_ref[0]                                           # (Ss, D)
    D = x.shape[-1]
    # self attention
    qkv = jnp.dot(x, sa_wqkv[...],
                  preferred_element_type=jnp.float32) + sa_bqkv[...]
    a = _mha_heads(qkv[:, :D], qkv[:, D:], sa_wo[...], sa_bo[...], nhead, scale)
    x1 = _ln(x + a, ln1g_ref[...], ln1b_ref[...])
    # cross attention (query from decoder stream, key/value from memory)
    q = jnp.dot(x1, ca_wq[...], preferred_element_type=jnp.float32) + ca_bq[...]
    kv = jnp.dot(mem, ca_wkv[...], preferred_element_type=jnp.float32) + ca_bkv[...]
    c = _mha_heads(q, kv, ca_wo[...], ca_bo[...], nhead, scale)
    x2 = _ln(x1 + c, ln2g_ref[...], ln2b_ref[...])
    # feed-forward
    f = _ffn(x2, w1_ref[...], b1_ref[...], w2_ref[...], b2_ref[...])
    o_ref[0] = _ln(x2 + f, ln3g_ref[...], ln3b_ref[...])


def decoder_layer(x, memory, p, nhead):
    """x: (B, St, D), memory: (B, Ss, D) -> (B, St, D)."""
    B, St, D = x.shape
    Ss = memory.shape[1]
    scale = 1.0 / math.sqrt(D // nhead)
    sa, ca = p["self_attn"], p["cross_attn"]
    x_spec = pl.BlockSpec((1, St, D), lambda b: (b, 0, 0))
    m_spec = pl.BlockSpec((1, Ss, D), lambda b: (b, 0, 0))
    weights = (sa["w_qkv"], sa["b_qkv"], sa["w_o"], sa["b_o"],
               p["ln1_g"], p["ln1_b"],
               ca["w_q"], ca["b_q"], ca["w_kv"], ca["b_kv"], ca["w_o"], ca["b_o"],
               p["ln2_g"], p["ln2_b"],
               p["w1"], p["b1"], p["w2"], p["b2"], p["ln3_g"], p["ln3_b"])
    return pl.pallas_call(
        functools.partial(_dec_layer_kernel, nhead=nhead, scale=scale),
        grid=(B,),
        out_shape=jax.ShapeDtypeStruct((B, St, D), jnp.float32),
        in_specs=[x_spec, m_spec] + [_full_spec(w.shape) for w in weights],
        out_specs=x_spec,
        compiler_params=pltpu.CompilerParams(dimension_semantics=("parallel",)),
    )(x, memory, *weights)


# ----------------------------------------------------------------------------
# Plain LayerNorm kernel (final encoder norm)
# ----------------------------------------------------------------------------
def _ln_kernel(x_ref, g_ref, b_ref, o_ref):
    o_ref[...] = _ln(x_ref[...], g_ref[...], b_ref[...])


def layernorm(x2d, g, b):
    N, D = x2d.shape
    return pl.pallas_call(
        _ln_kernel,
        grid=(1,),
        out_shape=jax.ShapeDtypeStruct((N, D), jnp.float32),
        in_specs=[_full_spec((N, D)), _full_spec((1, D)), _full_spec((1, D))],
        out_specs=_full_spec((N, D)),
    )(x2d, g, b)


# ----------------------------------------------------------------------------
# Fused final decoder norm + output linear + log_softmax
# ----------------------------------------------------------------------------
def _final_kernel(x_ref, g_ref, b_ref, w_ref, bd_ref, o_ref):
    xn = _ln(x_ref[...], g_ref[...], b_ref[...])
    z = jnp.dot(xn, w_ref[...], preferred_element_type=jnp.float32) + bd_ref[...]
    m = jnp.max(z, axis=-1, keepdims=True)
    zs = z - m
    lse = jnp.log(jnp.sum(jnp.exp(zs), axis=-1, keepdims=True))
    o_ref[...] = zs - lse


def final_norm_logits(x2d, g, b, w_dec, b_dec):
    N, D = x2d.shape
    V = w_dec.shape[1]
    return pl.pallas_call(
        _final_kernel,
        grid=(1,),
        out_shape=jax.ShapeDtypeStruct((N, V), jnp.float32),
        in_specs=[_full_spec((N, D)), _full_spec((1, D)), _full_spec((1, D)),
                  _full_spec((D, V)), _full_spec((1, V))],
        out_specs=_full_spec((N, V)),
    )(x2d, g, b, w_dec, b_dec)


# ----------------------------------------------------------------------------
# Model composition (embedding gather / PE stays in plain JAX)
# ----------------------------------------------------------------------------
def positional_encoding_table(max_len, d_model):
    position = jnp.arange(max_len, dtype=jnp.float32)[:, None]
    div_term = jnp.exp(jnp.arange(0, d_model, 2, dtype=jnp.float32)
                       * (-math.log(10000.0) / d_model))
    pe = jnp.zeros((max_len, d_model), jnp.float32)
    pe = pe.at[:, 0::2].set(jnp.sin(position * div_term))
    pe = pe.at[:, 1::2].set(jnp.cos(position * div_term))
    return pe                                           # (max_len, d_model)


def transformer_forward(params, src, tgt, *, d_model, nhead):
    """src: (Ss, B) int32, tgt: (St, B) int32 -> (St, B, out_vocab) log-probs."""
    D = d_model
    Ss, B = src.shape
    St = tgt.shape[0]

    # Embedding lookup + scale + positional encoding (dropout == identity in eval).
    # Internal layout is batch-major (B, S, D).
    src_e = params["emb_in"][src.T] * math.sqrt(D) + params["pe"][None, :Ss, :]
    tgt_e = params["emb_out"][tgt.T] * math.sqrt(D) + params["pe"][None, :St, :]

    mem = src_e
    for lp in params["enc_layers"]:
        mem = encoder_layer(mem, lp, nhead)
    mem = layernorm(mem.reshape(B * Ss, D),
                    params["enc_norm_g"], params["enc_norm_b"]).reshape(B, Ss, D)

    out = tgt_e
    for lp in params["dec_layers"]:
        out = decoder_layer(out, mem, lp, nhead)

    logp = final_norm_logits(out.reshape(B * St, D),
                             params["dec_norm_g"], params["dec_norm_b"],
                             params["w_dec"], params["b_dec"])      # (B*St, V)
    V = params["w_dec"].shape[1]
    return logp.reshape(B, St, V).transpose(1, 0, 2)                # (St, B, V)


# ----------------------------------------------------------------------------
# Deterministic synthetic parameters (PyTorch shapes, stored (in, out);
# QKV fused as (D, 3D), cross-attn KV fused as (D, 2D)).
# ----------------------------------------------------------------------------
def init_params(key, in_vocab, out_vocab, d_model, nhead, n_enc, n_dec, ffn_dim,
                max_len=512):
    keys = iter(jax.random.split(key, 512))

    def w(shape, scale=0.05):
        return scale * jax.random.normal(next(keys), shape, jnp.float32)

    def self_attn_params():
        return dict(
            w_qkv=w((d_model, 3 * d_model)),
            b_qkv=jnp.zeros((1, 3 * d_model), jnp.float32),
            w_o=w((d_model, d_model)),
            b_o=jnp.zeros((1, d_model), jnp.float32),
        )

    def cross_attn_params():
        return dict(
            w_q=w((d_model, d_model)), b_q=jnp.zeros((1, d_model), jnp.float32),
            w_kv=w((d_model, 2 * d_model)), b_kv=jnp.zeros((1, 2 * d_model), jnp.float32),
            w_o=w((d_model, d_model)), b_o=jnp.zeros((1, d_model), jnp.float32),
        )

    def enc_layer_params():
        return dict(
            self_attn=self_attn_params(),
            ln1_g=jnp.ones((1, d_model), jnp.float32),
            ln1_b=jnp.zeros((1, d_model), jnp.float32),
            w1=w((d_model, ffn_dim)), b1=jnp.zeros((1, ffn_dim), jnp.float32),
            w2=w((ffn_dim, d_model)), b2=jnp.zeros((1, d_model), jnp.float32),
            ln2_g=jnp.ones((1, d_model), jnp.float32),
            ln2_b=jnp.zeros((1, d_model), jnp.float32),
        )

    def dec_layer_params():
        p = enc_layer_params()
        p["cross_attn"] = cross_attn_params()
        p["ln3_g"] = jnp.ones((1, d_model), jnp.float32)
        p["ln3_b"] = jnp.zeros((1, d_model), jnp.float32)
        return p

    return dict(
        emb_in=w((in_vocab, d_model), 1.0),
        emb_out=w((out_vocab, d_model), 1.0),
        pe=positional_encoding_table(max_len, d_model),
        enc_layers=[enc_layer_params() for _ in range(n_enc)],
        dec_layers=[dec_layer_params() for _ in range(n_dec)],
        enc_norm_g=jnp.ones((1, d_model), jnp.float32),
        enc_norm_b=jnp.zeros((1, d_model), jnp.float32),
        dec_norm_g=jnp.ones((1, d_model), jnp.float32),
        dec_norm_b=jnp.zeros((1, d_model), jnp.float32),
        w_dec=w((d_model, out_vocab)),
        b_dec=jnp.zeros((1, out_vocab), jnp.float32),
    )


# ----------------------------------------------------------------------------
if __name__ == "__main__":
    # Small config: input_vocab=50, output_vocab=40, d_model=32, nhead=4,
    # 2 encoder layers, 2 decoder layers, dim_feedforward=64, dropout (eval).
    IN_VOCAB, OUT_VOCAB = 50, 40
    D_MODEL, NHEAD, N_ENC, N_DEC, FFN = 32, 4, 2, 2, 64
    S_SRC, S_TGT, BATCH = 10, 8, 2

    root = jax.random.PRNGKey(0)
    k_par, k_src, k_tgt = jax.random.split(root, 3)

    params = init_params(k_par, IN_VOCAB, OUT_VOCAB, D_MODEL, NHEAD, N_ENC, N_DEC, FFN)

    # Token ids, sequence-first like PyTorch batch_first=False: (S, B)
    src = jax.random.randint(k_src, (S_SRC, BATCH), 0, IN_VOCAB, dtype=jnp.int32)
    tgt = jax.random.randint(k_tgt, (S_TGT, BATCH), 0, OUT_VOCAB, dtype=jnp.int32)

    # TODO(synk): matmuls use TPU default precision (bf16 MXU passes); set
    # precision=HIGHEST if bit-level parity with fp32 PyTorch matmuls is needed.
    out = transformer_forward(params, src, tgt, d_model=D_MODEL, nhead=NHEAD)
    out = jax.block_until_ready(out)

    assert out.shape == (S_TGT, BATCH, OUT_VOCAB)
    assert bool(jnp.all(jnp.isfinite(out)))
    # log_softmax rows must exp-sum to 1
    assert bool(jnp.allclose(jnp.sum(jnp.exp(out), axis=-1), 1.0, atol=1e-4))
    print("KERNEL_OK")
</pallas_src>

<mosaic_0001>
module attributes {stable_mosaic.version = 11 : i64} {
  func.func @_enc_layer_kernel(%arg0: i32, %arg1: memref<1x10x32xf32, #tpu.memory_space<vmem>>, %arg2: memref<32x96xf32, #tpu.memory_space<vmem>>, %arg3: memref<1x96xf32, #tpu.memory_space<vmem>>, %arg4: memref<32x32xf32, #tpu.memory_space<vmem>>, %arg5: memref<1x32xf32, #tpu.memory_space<vmem>>, %arg6: memref<1x32xf32, #tpu.memory_space<vmem>>, %arg7: memref<1x32xf32, #tpu.memory_space<vmem>>, %arg8: memref<32x64xf32, #tpu.memory_space<vmem>>, %arg9: memref<1x64xf32, #tpu.memory_space<vmem>>, %arg10: memref<64x32xf32, #tpu.memory_space<vmem>>, %arg11: memref<1x32xf32, #tpu.memory_space<vmem>>, %arg12: memref<1x32xf32, #tpu.memory_space<vmem>>, %arg13: memref<1x32xf32, #tpu.memory_space<vmem>>, %arg14: memref<1x10x32xf32, #tpu.memory_space<vmem>>) attributes {dimension_semantics = [#tpu.dimension_semantics<parallel>], iteration_bounds = array<i64: 2>, scalar_prefetch = 0 : i64, scratch_operands = 0 : i64, tpu.core_type = #tpu.core_type<tc>, window_params = [{transform_indices = @transform_0, window_bounds = array<i64: 1, 10, 32>}, {pipeline_mode = #tpu.pipeline_mode<synchronous>, transform_indices = @transform_1, window_bounds = array<i64: 32, 96>}, {pipeline_mode = #tpu.pipeline_mode<synchronous>, transform_indices = @transform_2, window_bounds = array<i64: 1, 96>}, {pipeline_mode = #tpu.pipeline_mode<synchronous>, transform_indices = @transform_3, window_bounds = array<i64: 32, 32>}, {pipeline_mode = #tpu.pipeline_mode<synchronous>, transform_indices = @transform_4, window_bounds = array<i64: 1, 32>}, {pipeline_mode = #tpu.pipeline_mode<synchronous>, transform_indices = @transform_5, window_bounds = array<i64: 1, 32>}, {pipeline_mode = #tpu.pipeline_mode<synchronous>, transform_indices = @transform_6, window_bounds = array<i64: 1, 32>}, {pipeline_mode = #tpu.pipeline_mode<synchronous>, transform_indices = @transform_7, window_bounds = array<i64: 32, 64>}, {pipeline_mode = #tpu.pipeline_mode<synchronous>, transform_indices = @transform_8, window_bounds = array<i64: 1, 64>}, {pipeline_mode = #tpu.pipeline_mode<synchronous>, transform_indices = @transform_9, window_bounds = array<i64: 64, 32>}, {pipeline_mode = #tpu.pipeline_mode<synchronous>, transform_indices = @transform_10, window_bounds = array<i64: 1, 32>}, {pipeline_mode = #tpu.pipeline_mode<synchronous>, transform_indices = @transform_11, window_bounds = array<i64: 1, 32>}, {pipeline_mode = #tpu.pipeline_mode<synchronous>, transform_indices = @transform_12, window_bounds = array<i64: 1, 32>}, {transform_indices = @transform_13, window_bounds = array<i64: 1, 10, 32>}]} {
    %c0 = arith.constant 0 : index
    %c0_0 = arith.constant 0 : index
    %c0_1 = arith.constant 0 : index
    %0 = vector.load %arg1[%c0, %c0_0, %c0_1] : memref<1x10x32xf32, #tpu.memory_space<vmem>>, vector<1x10x32xf32>
    %1 = vector.shape_cast %0 : vector<1x10x32xf32> to vector<10x32xf32>
    %c0_2 = arith.constant 0 : index
    %c0_3 = arith.constant 0 : index
    %2 = vector.load %arg2[%c0_2, %c0_3] : memref<32x96xf32, #tpu.memory_space<vmem>>, vector<32x96xf32>
    %cst = arith.constant dense<0.000000e+00> : vector<10x96xf32>
    %3 = tpu.matmul %1, %2, %cst {dimension_numbers = #tpu.dot_dimension_numbers<[1], [0], [0], [1], [0, 0, 1, 1], [], []>} : vector<10x32xf32>, vector<32x96xf32>, vector<10x96xf32> -> vector<10x96xf32>
    %c0_4 = arith.constant 0 : index
    %c0_5 = arith.constant 0 : index
    %4 = vector.load %arg3[%c0_4, %c0_5] : memref<1x96xf32, #tpu.memory_space<vmem>>, vector<1x96xf32>
    %5 = vector.broadcast %4 : vector<1x96xf32> to vector<10x96xf32>
    %6 = arith.addf %3, %5 : vector<10x96xf32>
    %7 = vector.extract_strided_slice %6 {offsets = [0, 0], sizes = [10, 32], strides = [1, 1]} : vector<10x96xf32> to vector<10x32xf32>
    %8 = vector.extract_strided_slice %6 {offsets = [0, 32], sizes = [10, 64], strides = [1, 1]} : vector<10x96xf32> to vector<10x64xf32>
    %c0_6 = arith.constant 0 : index
    %c0_7 = arith.constant 0 : index
    %9 = vector.load %arg4[%c0_6, %c0_7] : memref<32x32xf32, #tpu.memory_space<vmem>>, vector<32x32xf32>
    %c0_8 = arith.constant 0 : index
    %c0_9 = arith.constant 0 : index
    %10 = vector.load %arg5[%c0_8, %c0_9] : memref<1x32xf32, #tpu.memory_space<vmem>>, vector<1x32xf32>
    %11 = vector.extract_strided_slice %7 {offsets = [0, 0], sizes = [10, 8], strides = [1, 1]} : vector<10x32xf32> to vector<10x8xf32>
    %cst_10 = arith.constant 0.353553385 : f32
    %12 = vector.broadcast %cst_10 : f32 to vector<10x8xf32>
    %13 = arith.mulf %11, %12 : vector<10x8xf32>
    %14 = vector.extract_strided_slice %8 {offsets = [0, 0], sizes = [10, 8], strides = [1, 1]} : vector<10x64xf32> to vector<10x8xf32>
    %15 = vector.extract_strided_slice %8 {offsets = [0, 32], sizes = [10, 8], strides = [1, 1]} : vector<10x64xf32> to vector<10x8xf32>
    %cst_11 = arith.constant dense<0.000000e+00> : vector<10x10xf32>
    %16 = tpu.matmul %13, %14, %cst_11 {dimension_numbers = #tpu.dot_dimension_numbers<[1], [1], [0], [0], [0, 0, 1, 0], [], []>} : vector<10x8xf32>, vector<10x8xf32>, vector<10x10xf32> -> vector<10x10xf32>
    %cst_12 = arith.constant dense<0xFF800000> : vector<10xf32>
    %17 = vector.multi_reduction <maximumf>, %16, %cst_12 [1] : vector<10x10xf32> to vector<10xf32>
    %18 = vector.shape_cast %17 : vector<10xf32> to vector<10x1xf32>
    %19 = vector.broadcast %18 : vector<10x1xf32> to vector<10x10xf32>
    %20 = arith.subf %16, %19 : vector<10x10xf32>
    %21 = math.exp %20 : vector<10x10xf32>
    %cst_13 = arith.constant dense<0.000000e+00> : vector<10xf32>
    %22 = vector.multi_reduction <add>, %21, %cst_13 [1] : vector<10x10xf32> to vector<10xf32>
    %23 = vector.shape_cast %22 : vector<10xf32> to vector<10x1xf32>
    %24 = tpu.reciprocal %23 {approx = true} : vector<10x1xf32> -> vector<10x1xf32>
    %25 = vector.broadcast %24 : vector<10x1xf32> to vector<10x10xf32>
    %26 = arith.mulf %21, %25 : vector<10x10xf32>
    %cst_14 = arith.constant dense<0.000000e+00> : vector<10x8xf32>
    %27 = tpu.matmul %26, %15, %cst_14 {dimension_numbers = #tpu.dot_dimension_numbers<[1], [0], [0], [1], [0, 0, 1, 1], [], []>} : vector<10x10xf32>, vector<10x8xf32>, vector<10x8xf32> -> vector<10x8xf32>
    %28 = vector.extract_strided_slice %9 {offsets = [0, 0], sizes = [8, 32], strides = [1, 1]} : vector<32x32xf32> to vector<8x32xf32>
    %cst_15 = arith.constant dense<0.000000e+00> : vector<10x32xf32>
    %29 = tpu.matmul %27, %28, %cst_15 {dimension_numbers = #tpu.dot_dimension_numbers<[1], [0], [0], [1], [0, 0, 1, 1], [], []>} : vector<10x8xf32>, vector<8x32xf32>, vector<10x32xf32> -> vector<10x32xf32>
    %30 = vector.extract_strided_slice %7 {offsets = [0, 8], sizes = [10, 8], strides = [1, 1]} : vector<10x32xf32> to vector<10x8xf32>
    %cst_16 = arith.constant 0.353553385 : f32
    %31 = vector.broadcast %cst_16 : f32 to vector<10x8xf32>
    %32 = arith.mulf %30, %31 : vector<10x8xf32>
    %33 = vector.extract_strided_slice %8 {offsets = [0, 8], sizes = [10, 8], strides = [1, 1]} : vector<10x64xf32> to vector<10x8xf32>
    %34 = vector.extract_strided_slice %8 {offsets = [0, 40], sizes = [10, 8], strides = [1, 1]} : vector<10x64xf32> to vector<10x8xf32>
    %cst_17 = arith.constant dense<0.000000e+00> : vector<10x10xf32>
    %35 = tpu.matmul %32, %33, %cst_17 {dimension_numbers = #tpu.dot_dimension_numbers<[1], [1], [0], [0], [0, 0, 1, 0], [], []>} : vector<10x8xf32>, vector<10x8xf32>, vector<10x10xf32> -> vector<10x10xf32>
    %cst_18 = arith.constant dense<0xFF800000> : vector<10xf32>
    %36 = vector.multi_reduction <maximumf>, %35, %cst_18 [1] : vector<10x10xf32> to vector<10xf32>
    %37 = vector.shape_cast %36 : vector<10xf32> to vector<10x1xf32>
    %38 = vector.broadcast %37 : vector<10x1xf32> to vector<10x10xf32>
    %39 = arith.subf %35, %38 : vector<10x10xf32>
    %40 = math.exp %39 : vector<10x10xf32>
    %cst_19 = arith.constant dense<0.000000e+00> : vector<10xf32>
    %41 = vector.multi_reduction <add>, %40, %cst_19 [1] : vector<10x10xf32> to vector<10xf32>
    %42 = vector.shape_cast %41 : vector<10xf32> to vector<10x1xf32>
    %43 = tpu.reciprocal %42 {approx = true} : vector<10x1xf32> -> vector<10x1xf32>
    %44 = vector.broadcast %43 : vector<10x1xf32> to vector<10x10xf32>
    %45 = arith.mulf %40, %44 : vector<10x10xf32>
    %cst_20 = arith.constant dense<0.000000e+00> : vector<10x8xf32>
    %46 = tpu.matmul %45, %34, %cst_20 {dimension_numbers = #tpu.dot_dimension_numbers<[1], [0], [0], [1], [0, 0, 1, 1], [], []>} : vector<10x10xf32>, vector<10x8xf32>, vector<10x8xf32> -> vector<10x8xf32>
    %47 = vector.extract_strided_slice %9 {offsets = [8, 0], sizes = [8, 32], strides = [1, 1]} : vector<32x32xf32> to vector<8x32xf32>
    %cst_21 = arith.constant dense<0.000000e+00> : vector<10x32xf32>
    %48 = tpu.matmul %46, %47, %cst_21 {dimension_numbers = #tpu.dot_dimension_numbers<[1], [0], [0], [1], [0, 0, 1, 1], [], []>} : vector<10x8xf32>, vector<8x32xf32>, vector<10x32xf32> -> vector<10x32xf32>
    %49 = arith.addf %29, %48 : vector<10x32xf32>
    %50 = vector.extract_strided_slice %7 {offsets = [0, 16], sizes = [10, 8], strides = [1, 1]} : vector<10x32xf32> to vector<10x8xf32>
    %cst_22 = arith.constant 0.353553385 : f32
    %51 = vector.broadcast %cst_22 : f32 to vector<10x8xf32>
    %52 = arith.mulf %50, %51 : vector<10x8xf32>
    %53 = vector.extract_strided_slice %8 {offsets = [0, 16], sizes = [10, 8], strides = [1, 1]} : vector<10x64xf32> to vector<10x8xf32>
    %54 = vector.extract_strided_slice %8 {offsets = [0, 48], sizes = [10, 8], strides = [1, 1]} : vector<10x64xf32> to vector<10x8xf32>
    %cst_23 = arith.constant dense<0.000000e+00> : vector<10x10xf32>
    %55 = tpu.matmul %52, %53, %cst_23 {dimension_numbers = #tpu.dot_dimension_numbers<[1], [1], [0], [0], [0, 0, 1, 0], [], []>} : vector<10x8xf32>, vector<10x8xf32>, vector<10x10xf32> -> vector<10x10xf32>
    %cst_24 = arith.constant dense<0xFF800000> : vector<10xf32>
    %56 = vector.multi_reduction <maximumf>, %55, %cst_24 [1] : vector<10x10xf32> to vector<10xf32>
    %57 = vector.shape_cast %56 : vector<10xf32> to vector<10x1xf32>
    %58 = vector.broadcast %57 : vector<10x1xf32> to vector<10x10xf32>
    %59 = arith.subf %55, %58 : vector<10x10xf32>
    %60 = math.exp %59 : vector<10x10xf32>
    %cst_25 = arith.constant dense<0.000000e+00> : vector<10xf32>
    %61 = vector.multi_reduction <add>, %60, %cst_25 [1] : vector<10x10xf32> to vector<10xf32>
    %62 = vector.shape_cast %61 : vector<10xf32> to vector<10x1xf32>
    %63 = tpu.reciprocal %62 {approx = true} : vector<10x1xf32> -> vector<10x1xf32>
    %64 = vector.broadcast %63 : vector<10x1xf32> to vector<10x10xf32>
    %65 = arith.mulf %60, %64 : vector<10x10xf32>
    %cst_26 = arith.constant dense<0.000000e+00> : vector<10x8xf32>
    %66 = tpu.matmul %65, %54, %cst_26 {dimension_numbers = #tpu.dot_dimension_numbers<[1], [0], [0], [1], [0, 0, 1, 1], [], []>} : vector<10x10xf32>, vector<10x8xf32>, vector<10x8xf32> -> vector<10x8xf32>
    %67 = vector.extract_strided_slice %9 {offsets = [16, 0], sizes = [8, 32], strides = [1, 1]} : vector<32x32xf32> to vector<8x32xf32>
    %cst_27 = arith.constant dense<0.000000e+00> : vector<10x32xf32>
    %68 = tpu.matmul %66, %67, %cst_27 {dimension_numbers = #tpu.dot_dimension_numbers<[1], [0], [0], [1], [0, 0, 1, 1], [], []>} : vector<10x8xf32>, vector<8x32xf32>, vector<10x32xf32> -> vector<10x32xf32>
    %69 = arith.addf %49, %68 : vector<10x32xf32>
    %70 = vector.extract_strided_slice %7 {offsets = [0, 24], sizes = [10, 8], strides = [1, 1]} : vector<10x32xf32> to vector<10x8xf32>
    %cst_28 = arith.constant 0.353553385 : f32
    %71 = vector.broadcast %cst_28 : f32 to vector<10x8xf32>
    %72 = arith.mulf %70, %71 : vector<10x8xf32>
    %73 = vector.extract_strided_slice %8 {offsets = [0, 24], sizes = [10, 8], strides = [1, 1]} : vector<10x64xf32> to vector<10x8xf32>
    %74 = vector.extract_strided_slice %8 {offsets = [0, 56], sizes = [10, 8], strides = [1, 1]} : vector<10x64xf32> to vector<10x8xf32>
    %cst_29 = arith.constant dense<0.000000e+00> : vector<10x10xf32>
    %75 = tpu.matmul %72, %73, %cst_29 {dimension_numbers = #tpu.dot_dimension_numbers<[1], [1], [0], [0], [0, 0, 1, 0], [], []>} : vector<10x8xf32>, vector<10x8xf32>, vector<10x10xf32> -> vector<10x10xf32>
    %cst_30 = arith.constant dense<0xFF800000> : vector<10xf32>
    %76 = vector.multi_reduction <maximumf>, %75, %cst_30 [1] : vector<10x10xf32> to vector<10xf32>
    %77 = vector.shape_cast %76 : vector<10xf32> to vector<10x1xf32>
    %78 = vector.broadcast %77 : vector<10x1xf32> to vector<10x10xf32>
    %79 = arith.subf %75, %78 : vector<10x10xf32>
    %80 = math.exp %79 : vector<10x10xf32>
    %cst_31 = arith.constant dense<0.000000e+00> : vector<10xf32>
    %81 = vector.multi_reduction <add>, %80, %cst_31 [1] : vector<10x10xf32> to vector<10xf32>
    %82 = vector.shape_cast %81 : vector<10xf32> to vector<10x1xf32>
    %83 = tpu.reciprocal %82 {approx = true} : vector<10x1xf32> -> vector<10x1xf32>
    %84 = vector.broadcast %83 : vector<10x1xf32> to vector<10x10xf32>
    %85 = arith.mulf %80, %84 : vector<10x10xf32>
    %cst_32 = arith.constant dense<0.000000e+00> : vector<10x8xf32>
    %86 = tpu.matmul %85, %74, %cst_32 {dimension_numbers = #tpu.dot_dimension_numbers<[1], [0], [0], [1], [0, 0, 1, 1], [], []>} : vector<10x10xf32>, vector<10x8xf32>, vector<10x8xf32> -> vector<10x8xf32>
    %87 = vector.extract_strided_slice %9 {offsets = [24, 0], sizes = [8, 32], strides = [1, 1]} : vector<32x32xf32> to vector<8x32xf32>
    %cst_33 = arith.constant dense<0.000000e+00> : vector<10x32xf32>
    %88 = tpu.matmul %86, %87, %cst_33 {dimension_numbers = #tpu.dot_dimension_numbers<[1], [0], [0], [1], [0, 0, 1, 1], [], []>} : vector<10x8xf32>, vector<8x32xf32>, vector<10x32xf32> -> vector<10x32xf32>
    %89 = arith.addf %69, %88 : vector<10x32xf32>
    %90 = vector.broadcast %10 : vector<1x32xf32> to vector<10x32xf32>
    %91 = arith.addf %89, %90 : vector<10x32xf32>
    %92 = arith.addf %1, %91 : vector<10x32xf32>
    %c0_34 = arith.constant 0 : index
    %c0_35 = arith.constant 0 : index
    %93 = vector.load %arg6[%c0_34, %c0_35] : memref<1x32xf32, #tpu.memory_space<vmem>>, vector<1x32xf32>
    %c0_36 = arith.constant 0 : index
    %c0_37 = arith.constant 0 : index
    %94 = vector.load %arg7[%c0_36, %c0_37] : memref<1x32xf32, #tpu.memory_space<vmem>>, vector<1x32xf32>
    %cst_38 = arith.constant dense<0.000000e+00> : vector<10xf32>
    %95 = vector.multi_reduction <add>, %92, %cst_38 [1] : vector<10x32xf32> to vector<10xf32>
    %96 = vector.shape_cast %95 : vector<10xf32> to vector<10x1xf32>
    %cst_39 = arith.constant 3.200000e+01 : f32
    %97 = vector.broadcast %cst_39 : f32 to vector<10x1xf32>
    %98 = arith.divf %96, %97 : vector<10x1xf32>
    %99 = vector.broadcast %98 : vector<10x1xf32> to vector<10x32xf32>
    %100 = arith.subf %92, %99 : vector<10x32xf32>
    %101 = arith.mulf %100, %100 : vector<10x32xf32>
    %cst_40 = arith.constant dense<0.000000e+00> : vector<10xf32>
    %102 = vector.multi_reduction <add>, %101, %cst_40 [1] : vector<10x32xf32> to vector<10xf32>
    %103 = vector.shape_cast %102 : vector<10xf32> to vector<10x1xf32>
    %cst_41 = arith.constant 3.200000e+01 : f32
    %104 = vector.broadcast %cst_41 : f32 to vector<10x1xf32>
    %105 = arith.divf %103, %104 : vector<10x1xf32>
    %cst_42 = arith.constant 9.99999974E-6 : f32
    %106 = vector.broadcast %cst_42 : f32 to vector<10x1xf32>
    %107 = arith.addf %105, %106 : vector<10x1xf32>
    %108 = math.rsqrt %107 : vector<10x1xf32>
    %109 = vector.broadcast %108 : vector<10x1xf32> to vector<10x32xf32>
    %110 = arith.mulf %100, %109 : vector<10x32xf32>
    %111 = vector.broadcast %93 : vector<1x32xf32> to vector<10x32xf32>
    %112 = arith.mulf %110, %111 : vector<10x32xf32>
    %113 = vector.broadcast %94 : vector<1x32xf32> to vector<10x32xf32>
    %114 = arith.addf %112, %113 : vector<10x32xf32>
    %c0_43 = arith.constant 0 : index
    %c0_44 = arith.constant 0 : index
    %115 = vector.load %arg8[%c0_43, %c0_44] : memref<32x64xf32, #tpu.memory_space<vmem>>, vector<32x64xf32>
    %c0_45 = arith.constant 0 : index
    %c0_46 = arith.constant 0 : index
    %116 = vector.load %arg9[%c0_45, %c0_46] : memref<1x64xf32, #tpu.memory_space<vmem>>, vector<1x64xf32>
    %c0_47 = arith.constant 0 : index
    %c0_48 = arith.constant 0 : index
    %117 = vector.load %arg10[%c0_47, %c0_48] : memref<64x32xf32, #tpu.memory_space<vmem>>, vector<64x32xf32>
    %c0_49 = arith.constant 0 : index
    %c0_50 = arith.constant 0 : index
    %118 = vector.load %arg11[%c0_49, %c0_50] : memref<1x32xf32, #tpu.memory_space<vmem>>, vector<1x32xf32>
    %cst_51 = arith.constant dense<0.000000e+00> : vector<10x64xf32>
    %119 = tpu.matmul %114, %115, %cst_51 {dimension_numbers = #tpu.dot_dimension_numbers<[1], [0], [0], [1], [0, 0, 1, 1], [], []>} : vector<10x32xf32>, vector<32x64xf32>, vector<10x64xf32> -> vector<10x64xf32>
    %120 = vector.broadcast %116 : vector<1x64xf32> to vector<10x64xf32>
    %121 = arith.addf %119, %120 : vector<10x64xf32>
    %cst_52 = arith.constant 0.000000e+00 : f32
    %122 = vector.broadcast %cst_52 : f32 to vector<10x64xf32>
    %123 = arith.maximumf %121, %122 : vector<10x64xf32>
    %cst_53 = arith.constant dense<0.000000e+00> : vector<10x32xf32>
    %124 = tpu.matmul %123, %117, %cst_53 {dimension_numbers = #tpu.dot_dimension_numbers<[1], [0], [0], [1], [0, 0, 1, 1], [], []>} : vector<10x64xf32>, vector<64x32xf32>, vector<10x32xf32> -> vector<10x32xf32>
    %125 = vector.broadcast %118 : vector<1x32xf32> to vector<10x32xf32>
    %126 = arith.addf %124, %125 : vector<10x32xf32>
    %127 = arith.addf %114, %126 : vector<10x32xf32>
    %c0_54 = arith.constant 0 : index
    %c0_55 = arith.constant 0 : index
    %128 = vector.load %arg12[%c0_54, %c0_55] : memref<1x32xf32, #tpu.memory_space<vmem>>, vector<1x32xf32>
    %c0_56 = arith.constant 0 : index
    %c0_57 = arith.constant 0 : index
    %129 = vector.load %arg13[%c0_56, %c0_57] : memref<1x32xf32, #tpu.memory_space<vmem>>, vector<1x32xf32>
    %cst_58 = arith.constant dense<0.000000e+00> : vector<10xf32>
    %130 = vector.multi_reduction <add>, %127, %cst_58 [1] : vector<10x32xf32> to vector<10xf32>
    %131 = vector.shape_cast %130 : vector<10xf32> to vector<10x1xf32>
    %cst_59 = arith.constant 3.200000e+01 : f32
    %132 = vector.broadcast %cst_59 : f32 to vector<10x1xf32>
    %133 = arith.divf %131, %132 : vector<10x1xf32>
    %134 = vector.broadcast %133 : vector<10x1xf32> to vector<10x32xf32>
    %135 = arith.subf %127, %134 : vector<10x32xf32>
    %136 = arith.mulf %135, %135 : vector<10x32xf32>
    %cst_60 = arith.constant dense<0.000000e+00> : vector<10xf32>
    %137 = vector.multi_reduction <add>, %136, %cst_60 [1] : vector<10x32xf32> to vector<10xf32>
    %138 = vector.shape_cast %137 : vector<10xf32> to vector<10x1xf32>
    %cst_61 = arith.constant 3.200000e+01 : f32
    %139 = vector.broadcast %cst_61 : f32 to vector<10x1xf32>
    %140 = arith.divf %138, %139 : vector<10x1xf32>
    %cst_62 = arith.constant 9.99999974E-6 : f32
    %141 = vector.broadcast %cst_62 : f32 to vector<10x1xf32>
    %142 = arith.addf %140, %141 : vector<10x1xf32>
    %143 = math.rsqrt %142 : vector<10x1xf32>
    %144 = vector.broadcast %143 : vector<10x1xf32> to vector<10x32xf32>
    %145 = arith.mulf %135, %144 : vector<10x32xf32>
    %146 = vector.broadcast %128 : vector<1x32xf32> to vector<10x32xf32>
    %147 = arith.mulf %145, %146 : vector<10x32xf32>
    %148 = vector.broadcast %129 : vector<1x32xf32> to vector<10x32xf32>
    %149 = arith.addf %147, %148 : vector<10x32xf32>
    %c0_63 = arith.constant 0 : index
    %c0_64 = arith.constant 0 : index
    %c0_65 = arith.constant 0 : index
    %150 = vector.load %arg14[%c0_63, %c0_64, %c0_65] : memref<1x10x32xf32, #tpu.memory_space<vmem>>, vector<1x10x32xf32>
    %151 = vector.shape_cast %150 : vector<1x10x32xf32> to vector<10x32xf32>
    %152 = vector.shape_cast %149 : vector<10x32xf32> to vector<1x10x32xf32>
    tpu.vector_store %arg14[%c0_63, %c0_64, %c0_65], %152 {strides = array<i32>} : memref<1x10x32xf32, #tpu.memory_space<vmem>>, vector<1x10x32xf32>,
    return
  }
  func.func @transform_0(%arg0: i32) -> (i32, i32, i32) {
    %c0_i32 = arith.constant 0 : i32
    %c0_i32_0 = arith.constant 0 : i32
    %c0_i32_1 = arith.constant 0 : i32
    return %arg0, %c0_i32, %c0_i32_0 : i32, i32, i32
  }
  func.func @transform_1(%arg0: i32) -> (i32, i32) {
    %c0_i32 = arith.constant 0 : i32
    %c0_i32_0 = arith.constant 0 : i32
    %c0_i32_1 = arith.constant 0 : i32
    return %c0_i32, %c0_i32_0 : i32, i32
  }
  func.func @transform_2(%arg0: i32) -> (i32, i32) {
    %c0_i32 = arith.constant 0 : i32
    %c0_i32_0 = arith.constant 0 : i32
    %c0_i32_1 = arith.constant 0 : i32
    return %c0_i32, %c0_i32_0 : i32, i32
  }
  func.func @transform_3(%arg0: i32) -> (i32, i32) {
    %c0_i32 = arith.constant 0 : i32
    %c0_i32_0 = arith.constant 0 : i32
    %c0_i32_1 = arith.constant 0 : i32
    return %c0_i32, %c0_i32_0 : i32, i32
  }
  func.func @transform_4(%arg0: i32) -> (i32, i32) {
    %c0_i32 = arith.constant 0 : i32
    %c0_i32_0 = arith.constant 0 : i32
    %c0_i32_1 = arith.constant 0 : i32
    return %c0_i32, %c0_i32_0 : i32, i32
  }
  func.func @transform_5(%arg0: i32) -> (i32, i32) {
    %c0_i32 = arith.constant 0 : i32
    %c0_i32_0 = arith.constant 0 : i32
    %c0_i32_1 = arith.constant 0 : i32
    return %c0_i32, %c0_i32_0 : i32, i32
  }
  func.func @transform_6(%arg0: i32) -> (i32, i32) {
    %c0_i32 = arith.constant 0 : i32
    %c0_i32_0 = arith.constant 0 : i32
    %c0_i32_1 = arith.constant 0 : i32
    return %c0_i32, %c0_i32_0 : i32, i32
  }
  func.func @transform_7(%arg0: i32) -> (i32, i32) {
    %c0_i32 = arith.constant 0 : i32
    %c0_i32_0 = arith.constant 0 : i32
    %c0_i32_1 = arith.constant 0 : i32
    return %c0_i32, %c0_i32_0 : i32, i32
  }
  func.func @transform_8(%arg0: i32) -> (i32, i32) {
    %c0_i32 = arith.constant 0 : i32
    %c0_i32_0 = arith.constant 0 : i32
    %c0_i32_1 = arith.constant 0 : i32
    return %c0_i32, %c0_i32_0 : i32, i32
  }
  func.func @transform_9(%arg0: i32) -> (i32, i32) {
    %c0_i32 = arith.constant 0 : i32
    %c0_i32_0 = arith.constant 0 : i32
    %c0_i32_1 = arith.constant 0 : i32
    return %c0_i32, %c0_i32_0 : i32, i32
  }
  func.func @transform_10(%arg0: i32) -> (i32, i32) {
    %c0_i32 = arith.constant 0 : i32
    %c0_i32_0 = arith.constant 0 : i32
    %c0_i32_1 = arith.constant 0 : i32
    return %c0_i32, %c0_i32_0 : i32, i32
  }
  func.func @transform_11(%arg0: i32) -> (i32, i32) {
    %c0_i32 = arith.constant 0 : i32
    %c0_i32_0 = arith.constant 0 : i32
    %c0_i32_1 = arith.constant 0 : i32
    return %c0_i32, %c0_i32_0 : i32, i32
  }
  func.func @transform_12(%arg0: i32) -> (i32, i32) {
    %c0_i32 = arith.constant 0 : i32
    %c0_i32_0 = arith.constant 0 : i32
    %c0_i32_1 = arith.constant 0 : i32
    return %c0_i32, %c0_i32_0 : i32, i32
  }
  func.func @transform_13(%arg0: i32) -> (i32, i32, i32) {
    %c0_i32 = arith.constant 0 : i32
    %c0_i32_0 = arith.constant 0 : i32
    %c0_i32_1 = arith.constant 0 : i32
    return %arg0, %c0_i32, %c0_i32_0 : i32, i32, i32
  }
}

</mosaic_0001>

<llo_original>
// kernel: tpu_custom_call.1
$region0: #{tpu_custom_call.1}
  #allocation0 [shape = 'u32[]', space=smem, size = 0x4, offset = 0x4, fixed_abs, tag = 'smem constant byte address 0x4 - core index']
  #allocation1 [shape = 'u32[144,128]{1,0:T(1,128)}', space=vmem, size = 0x12000, scoped, tag = 'internal scratch']
  %s0 = inlined_call_operand.vmem [shape: f32[2,10,32], index: 0, kind: input, shape index: {}]
  %s1 = inlined_call_operand.vmem [shape: f32[32,96], index: 1, kind: input, shape index: {}]
  %s2 = inlined_call_operand.vmem [shape: f32[1,96], index: 2, kind: input, shape index: {}]
  %s3 = inlined_call_operand.vmem [shape: f32[32,32], index: 3, kind: input, shape index: {}]
  %s4 = inlined_call_operand.vmem [shape: f32[1,32], index: 4, kind: input, shape index: {}]
  %s5 = inlined_call_operand.vmem [shape: f32[1,32], index: 5, kind: input, shape index: {}]
  %s6 = inlined_call_operand.vmem [shape: f32[1,32], index: 6, kind: input, shape index: {}]
  %s7 = inlined_call_operand.vmem [shape: f32[32,64], index: 7, kind: input, shape index: {}]
  %s8 = inlined_call_operand.vmem [shape: f32[1,64], index: 8, kind: input, shape index: {}]
  %s9 = inlined_call_operand.vmem [shape: f32[64,32], index: 9, kind: input, shape index: {}]
  %s10 = inlined_call_operand.vmem [shape: f32[1,32], index: 10, kind: input, shape index: {}]
  %s11 = inlined_call_operand.vmem [shape: f32[1,32], index: 11, kind: input, shape index: {}]
  %s12 = inlined_call_operand.vmem [shape: f32[1,32], index: 12, kind: input, shape index: {}]
  %s13 = inlined_call_operand.vmem [shape: f32[2,10,32], index: 13, kind: output, shape index: {}]
  %s14 = sld [smem:[#allocation0]]
  $region85: #{tpu_custom_call.1} parent=0
    _
  %s16 = ssub.s32 1, %s14
  %s17 = scalar_select 0, %s16, %s14
  loop: start=0, step=1, limit=4
  $region2: #{tpu_custom_call.1} parent=0 // loop_pre_header
    _
  $region3: #{tpu_custom_call.1} parent=0 // loop_header
    %s19 = sphi 0, %s23
    %p20 = scmp.ge.s32.totalorder %s19, 4
    %s29 = sphi 0, %s31
    %s32 = sphi 0, %s29
    %s33 = sphi 0, %s32
    %s49 = sphi 0, %s33
    %s53 = sphi 0, %s53
    %s55 = sphi 0, %s53
    %s56 = sphi 0, %s55
    %s70 = sphi 0, %s56
    %s74 = sphi 0, %s74
    %s76 = sphi 0, %s74
    %s77 = sphi 0, %s76
    %s91 = sphi 0, %s77
    %s95 = sphi 0, %s95
    %s97 = sphi 0, %s95
    %s98 = sphi 0, %s97
    %s112 = sphi 0, %s98
    %s116 = sphi 0, %s116
    %s118 = sphi 0, %s116
    %s119 = sphi 0, %s118
    %s133 = sphi 0, %s119
    %s137 = sphi 0, %s137
    %s139 = sphi 0, %s137
    %s140 = sphi 0, %s139
    %s154 = sphi 0, %s140
    %s158 = sphi 0, %s158
    %s160 = sphi 0, %s158
    %s161 = sphi 0, %s160
    %s175 = sphi 0, %s161
    %s179 = sphi 0, %s179
    %s181 = sphi 0, %s179
    %s182 = sphi 0, %s181
    %s196 = sphi 0, %s182
    %s200 = sphi 0, %s200
    %s202 = sphi 0, %s200
    %s203 = sphi 0, %s202
    %s217 = sphi 0, %s203
    %s221 = sphi 0, %s221
    %s223 = sphi 0, %s221
    %s224 = sphi 0, %s223
    %s238 = sphi 0, %s224
    %s242 = sphi 0, %s242
    %s244 = sphi 0, %s242
    %s245 = sphi 0, %s244
    %s259 = sphi 0, %s245
    %s263 = sphi 0, %s263
    %s265 = sphi 0, %s263
    %s266 = sphi 0, %s265
    %s280 = sphi 0, %s266
    %s284 = sphi 0, %s284
    %s286 = sphi 0, %s284
    %s287 = sphi 0, %s286
    %s301 = sphi 0, %s287
    %s307 = sphi 0, %s309
    %s310 = sphi 0, %s307
    %s311 = sphi 0, %s310
    %s327 = sphi 0, %s311
  $region4: #{tpu_custom_call.1} parent=0 // loop_header_branch
    %22 = sbr.rel (%p20) target = $region8
  $region5: #{tpu_custom_call.1} parent=0 // loop_body
    %s24 = ssub.s32 %s19, 1
    %s25 = ssub.s32 %s19, 2
    %s26 = sadd.s32 %s19, 1
    %s27 = ssub.s32 %s19, %s26
    %p28 = scmp.eq.s32.totalorder %s27, 0
    %s30 = sadd.s32 %s29, 1
    %s31 = scalar_select %p28, %s29, %s30
    %p34 = pneg %p28
    %p35 = scmp.eq.s32.totalorder %s19, 1
    %p36 = por %p34, %p35
    %p37 = scmp.ne.s32.totalorder %s29, %s32
    %p38 = scmp.eq.s32.totalorder %s19, 0
    %p39 = por %p37, %p38
    %p40 = scmp.ne.s32.totalorder %s29, %s32
    %p41 = scmp.eq.s32.totalorder %s24, 1
    %p42 = por %p40, %p41
    %p43 = scmp.ne.s32.totalorder %s32, %s33
    %p44 = scmp.eq.s32.totalorder %s24, 0
    %p45 = por %p43, %p44
    %p46 = scmp.ne.s32.totalorder %s32, %s33
    %p47 = scmp.eq.s32.totalorder %s25, 1
    %p48 = por %p46, %p47
    %p50 = scmp.ne.s32.totalorder %s33, %s49
    %p51 = scmp.eq.s32.totalorder %s25, 0
    %p52 = por %p50, %p51
    %s54 = sadd.s32 %s53, 1
    %p57 = scmp.eq.s32.totalorder %s19, 1
    %p58 = scmp.ne.s32.totalorder %s53, %s55
    %p59 = scmp.eq.s32.totalorder %s19, 0
    %p60 = por %p58, %p59
    %p61 = scmp.ne.s32.totalorder %s53, %s55
    %p62 = scmp.eq.s32.totalorder %s24, 1
    %p63 = por %p61, %p62
    %p64 = scmp.ne.s32.totalorder %s55, %s56
    %p65 = scmp.eq.s32.totalorder %s24, 0
    %p66 = por %p64, %p65
    %p67 = scmp.ne.s32.totalorder %s55, %s56
    %p68 = scmp.eq.s32.totalorder %s25, 1
    %p69 = por %p67, %p68
    %p71 = scmp.ne.s32.totalorder %s56, %s70
    %p72 = scmp.eq.s32.totalorder %s25, 0
    %p73 = por %p71, %p72
    %s75 = sadd.s32 %s74, 1
    %p78 = scmp.eq.s32.totalorder %s19, 1
    %p79 = scmp.ne.s32.totalorder %s74, %s76
    %p80 = scmp.eq.s32.totalorder %s19, 0
    %p81 = por %p79, %p80
    %p82 = scmp.ne.s32.totalorder %s74, %s76
    %p83 = scmp.eq.s32.totalorder %s24, 1
    %p84 = por %p82, %p83
    %p85 = scmp.ne.s32.totalorder %s76, %s77
    %p86 = scmp.eq.s32.totalorder %s24, 0
    %p87 = por %p85, %p86
    %p88 = scmp.ne.s32.totalorder %s76, %s77
    %p89 = scmp.eq.s32.totalorder %s25, 1
    %p90 = por %p88, %p89
    %p92 = scmp.ne.s32.totalorder %s77, %s91
    %p93 = scmp.eq.s32.totalorder %s25, 0
    %p94 = por %p92, %p93
    %s96 = sadd.s32 %s95, 1
    %p99 = scmp.eq.s32.totalorder %s19, 1
    %p100 = scmp.ne.s32.totalorder %s95, %s97
    %p101 = scmp.eq.s32.totalorder %s19, 0
    %p102 = por %p100, %p101
    %p103 = scmp.ne.s32.totalorder %s95, %s97
    %p104 = scmp.eq.s32.totalorder %s24, 1
    %p105 = por %p103, %p104
    %p106 = scmp.ne.s32.totalorder %s97, %s98
    %p107 = scmp.eq.s32.totalorder %s24, 0
    %p108 = por %p106, %p107
    %p109 = scmp.ne.s32.totalorder %s97, %s98
    %p110 = scmp.eq.s32.totalorder %s25, 1
    %p111 = por %p109, %p110
    %p113 = scmp.ne.s32.totalorder %s98, %s112
    %p114 = scmp.eq.s32.totalorder %s25, 0
    %p115 = por %p113, %p114
    %s117 = sadd.s32 %s116, 1
    %p120 = scmp.eq.s32.totalorder %s19, 1
    %p121 = scmp.ne.s32.totalorder %s116, %s118
    %p122 = scmp.eq.s32.totalorder %s19, 0
    %p123 = por %p121, %p122
    %p124 = scmp.ne.s32.totalorder %s116, %s118
    %p125 = scmp.eq.s32.totalorder %s24, 1
    %p126 = por %p124, %p125
    %p127 = scmp.ne.s32.totalorder %s118, %s119
    %p128 = scmp.eq.s32.totalorder %s24, 0
    %p129 = por %p127, %p128
    %p130 = scmp.ne.s32.totalorder %s118, %s119
    %p131 = scmp.eq.s32.totalorder %s25, 1
    %p132 = por %p130, %p131
    %p134 = scmp.ne.s32.totalorder %s119, %s133
    %p135 = scmp.eq.s32.totalorder %s25, 0
    %p136 = por %p134, %p135
    %s138 = sadd.s32 %s137, 1
    %p141 = scmp.eq.s32.totalorder %s19, 1
    %p142 = scmp.ne.s32.totalorder %s137, %s139
    %p143 = scmp.eq.s32.totalorder %s19, 0
    %p144 = por %p142, %p143
    %p145 = scmp.ne.s32.totalorder %s137, %s139
    %p146 = scmp.eq.s32.totalorder %s24, 1
    %p147 = por %p145, %p146
    %p148 = scmp.ne.s32.totalorder %s139, %s140
    %p149 = scmp.eq.s32.totalorder %s24, 0
    %p150 = por %p148, %p149
    %p151 = scmp.ne.s32.totalorder %s139, %s140
    %p152 = scmp.eq.s32.totalorder %s25, 1
    %p153 = por %p151, %p152
    %p155 = scmp.ne.s32.totalorder %s140, %s154
    %p156 = scmp.eq.s32.totalorder %s25, 0
    %p157 = por %p155, %p156
    %s159 = sadd.s32 %s158, 1
    %p162 = scmp.eq.s32.totalorder %s19, 1
    %p163 = scmp.ne.s32.totalorder %s158, %s160
    %p164 = scmp.eq.s32.totalorder %s19, 0
    %p165 = por %p163, %p164
    %p166 = scmp.ne.s32.totalorder %s158, %s160
    %p167 = scmp.eq.s32.totalorder %s24, 1
    %p168 = por %p166, %p167
    %p169 = scmp.ne.s32.totalorder %s160, %s161
    %p170 = scmp.eq.s32.totalorder %s24, 0
    %p171 = por %p169, %p170
    %p172 = scmp.ne.s32.totalorder %s160, %s161
    %p173 = scmp.eq.s32.totalorder %s25, 1
    %p174 = por %p172, %p173
    %p176 = scmp.ne.s32.totalorder %s161, %s175
    %p177 = scmp.eq.s32.totalorder %s25, 0
    %p178 = por %p176, %p177
    %s180 = sadd.s32 %s179, 1
    %p183 = scmp.eq.s32.totalorder %s19, 1
    %p184 = scmp.ne.s32.totalorder %s179, %s181
    %p185 = scmp.eq.s32.totalorder %s19, 0
    %p186 = por %p184, %p185
    %p187 = scmp.ne.s32.totalorder %s179, %s181
    %p188 = scmp.eq.s32.totalorder %s24, 1
    %p189 = por %p187, %p188
    %p190 = scmp.ne.s32.totalorder %s181, %s182
    %p191 = scmp.eq.s32.totalorder %s24, 0
    %p192 = por %p190, %p191
    %p193 = scmp.ne.s32.totalorder %s181, %s182
    %p194 = scmp.eq.s32.totalorder %s25, 1
    %p195 = por %p193, %p194
    %p197 = scmp.ne.s32.totalorder %s182, %s196
    %p198 = scmp.eq.s32.totalorder %s25, 0
    %p199 = por %p197, %p198
    %s201 = sadd.s32 %s200, 1
    %p204 = scmp.eq.s32.totalorder %s19, 1
    %p205 = scmp.ne.s32.totalorder %s200, %s202
    %p206 = scmp.eq.s32.totalorder %s19, 0
    %p207 = por %p205, %p206
    %p208 = scmp.ne.s32.totalorder %s200, %s202
    %p209 = scmp.eq.s32.totalorder %s24, 1
    %p210 = por %p208, %p209
    %p211 = scmp.ne.s32.totalorder %s202, %s203
    %p212 = scmp.eq.s32.totalorder %s24, 0
    %p213 = por %p211, %p212
    %p214 = scmp.ne.s32.totalorder %s202, %s203
    %p215 = scmp.eq.s32.totalorder %s25, 1
    %p216 = por %p214, %p215
    %p218 = scmp.ne.s32.totalorder %s203, %s217
    %p219 = scmp.eq.s32.totalorder %s25, 0
    %p220 = por %p218, %p219
    %s222 = sadd.s32 %s221, 1
    %p225 = scmp.eq.s32.totalorder %s19, 1
    %p226 = scmp.ne.s32.totalorder %s221, %s223
    %p227 = scmp.eq.s32.totalorder %s19, 0
    %p228 = por %p226, %p227
    %p229 = scmp.ne.s32.totalorder %s221, %s223
    %p230 = scmp.eq.s32.totalorder %s24, 1
    %p231 = por %p229, %p230
    %p232 = scmp.ne.s32.totalorder %s223, %s224
    %p233 = scmp.eq.s32.totalorder %s24, 0
    %p234 = por %p232, %p233
    %p235 = scmp.ne.s32.totalorder %s223, %s224
    %p236 = scmp.eq.s32.totalorder %s25, 1
    %p237 = por %p235, %p236
    %p239 = scmp.ne.s32.totalorder %s224, %s238
    %p240 = scmp.eq.s32.totalorder %s25, 0
    %p241 = por %p239, %p240
    %s243 = sadd.s32 %s242, 1
    %p246 = scmp.eq.s32.totalorder %s19, 1
    %p247 = scmp.ne.s32.totalorder %s242, %s244
    %p248 = scmp.eq.s32.totalorder %s19, 0
    %p249 = por %p247, %p248
    %p250 = scmp.ne.s32.totalorder %s242, %s244
    %p251 = scmp.eq.s32.totalorder %s24, 1
    %p252 = por %p250, %p251
    %p253 = scmp.ne.s32.totalorder %s244, %s245
    %p254 = scmp.eq.s32.totalorder %s24, 0
    %p255 = por %p253, %p254
    %p256 = scmp.ne.s32.totalorder %s244, %s245
    %p257 = scmp.eq.s32.totalorder %s25, 1
    %p258 = por %p256, %p257
    %p260 = scmp.ne.s32.totalorder %s245, %s259
    %p261 = scmp.eq.s32.totalorder %s25, 0
    %p262 = por %p260, %p261
    %s264 = sadd.s32 %s263, 1
    %p267 = scmp.eq.s32.totalorder %s19, 1
    %p268 = scmp.ne.s32.totalorder %s263, %s265
    %p269 = scmp.eq.s32.totalorder %s19, 0
    %p270 = por %p268, %p269
    %p271 = scmp.ne.s32.totalorder %s263, %s265
    %p272 = scmp.eq.s32.totalorder %s24, 1
    %p273 = por %p271, %p272
    %p274 = scmp.ne.s32.totalorder %s265, %s266
    %p275 = scmp.eq.s32.totalorder %s24, 0
    %p276 = por %p274, %p275
    %p277 = scmp.ne.s32.totalorder %s265, %s266
    %p278 = scmp.eq.s32.totalorder %s25, 1
    %p279 = por %p277, %p278
    %p281 = scmp.ne.s32.totalorder %s266, %s280
    %p282 = scmp.eq.s32.totalorder %s25, 0
    %p283 = por %p281, %p282
    %s285 = sadd.s32 %s284, 1
    %p288 = scmp.eq.s32.totalorder %s19, 1
    %p289 = scmp.ne.s32.totalorder %s284, %s286
    %p290 = scmp.eq.s32.totalorder %s19, 0
    %p291 = por %p289, %p290
    %p292 = scmp.ne.s32.totalorder %s284, %s286
    %p293 = scmp.eq.s32.totalorder %s24, 1
    %p294 = por %p292, %p293
    %p295 = scmp.ne.s32.totalorder %s286, %s287
    %p296 = scmp.eq.s32.totalorder %s24, 0
    %p297 = por %p295, %p296
    %p298 = scmp.ne.s32.totalorder %s286, %s287
    %p299 = scmp.eq.s32.totalorder %s25, 1
    %p300 = por %p298, %p299
    %p302 = scmp.ne.s32.totalorder %s287, %s301
    %p303 = scmp.eq.s32.totalorder %s25, 0
    %p304 = por %p302, %p303
    %s305 = ssub.s32 %s19, %s26
    %p306 = scmp.eq.s32.totalorder %s305, 0
    %s308 = sadd.s32 %s307, 1
    %s309 = scalar_select %p306, %s307, %s308
    %p312 = pneg %p306
    %p313 = scmp.eq.s32.totalorder %s19, 1
    %p314 = por %p312, %p313
    %p315 = scmp.ne.s32.totalorder %s307, %s310
    %p316 = scmp.eq.s32.totalorder %s19, 0
    %p317 = por %p315, %p316
    %p318 = scmp.ne.s32.totalorder %s307, %s310
    %p319 = scmp.eq.s32.totalorder %s24, 1
    %p320 = por %p318, %p319
    %p321 = scmp.ne.s32.totalorder %s310, %s311
    %p322 = scmp.eq.s32.totalorder %s24, 0
    %p323 = por %p321, %p322
    %p324 = scmp.ne.s32.totalorder %s310, %s311
    %p325 = scmp.eq.s32.totalorder %s25, 1
    %p326 = por %p324, %p325
    %p328 = scmp.ne.s32.totalorder %s311, %s327
    %p329 = scmp.eq.s32.totalorder %s25, 0
    %p330 = por %p328, %p329
    %p331 = scmp.le.s32.totalorder 1, %s19
    %p332 = scmp.lt.s32.totalorder %s19, 3
    %p333 = pnand %p331, %p332
    %p334 = pneg %p333
    // Predicated region
    $region9: #{tpu_custom_call.1} parent=5 // pred_check
      _
    $region10: #{tpu_custom_call.1} parent=5 // pred_check_branch
      %336 = sbr.rel (%p333) target = $region12
    $region11: #{tpu_custom_call.1} parent=5 // pred_region
      %s337 = ssub.s32 %s19, 1
      // Predicated region
      $region13: #{tpu_custom_call.1} parent=11 // pred_check
        %p338 = pneg %p66
      $region14: #{tpu_custom_call.1} parent=11 // pred_check_branch
        %340 = sbr.rel (%p338) target = $region16
      $region15: #{tpu_custom_call.1} parent=11 // pred_region
        _
      $region16: #{tpu_custom_call.1} parent=11 // pred_fallthru
        _
      // Predicated region
      $region17: #{tpu_custom_call.1} parent=11 // pred_check
        %p341 = pneg %p87
      $region18: #{tpu_custom_call.1} parent=11 // pred_check_branch
        %343 = sbr.rel (%p341) target = $region20
      $region19: #{tpu_custom_call.1} parent=11 // pred_region
        _
      $region20: #{tpu_custom_call.1} parent=11 // pred_fallthru
        _
      // Predicated region
      $region21: #{tpu_custom_call.1} parent=11 // pred_check
        %p344 = pneg %p108
      $region22: #{tpu_custom_call.1} parent=11 // pred_check_branch
        %346 = sbr.rel (%p344) target = $region24
      $region23: #{tpu_custom_call.1} parent=11 // pred_region
        _
      $region24: #{tpu_custom_call.1} parent=11 // pred_fallthru
        _
      // Predicated region
      $region25: #{tpu_custom_call.1} parent=11 // pred_check
        %p347 = pneg %p129
      $region26: #{tpu_custom_call.1} parent=11 // pred_check_branch
        %349 = sbr.rel (%p347) target = $region28
      $region27: #{tpu_custom_call.1} parent=11 // pred_region
        _
      $region28: #{tpu_custom_call.1} parent=11 // pred_fallthru
        _
      // Predicated region
      $region29: #{tpu_custom_call.1} parent=11 // pred_check
        %p350 = pneg %p150
      $region30: #{tpu_custom_call.1} parent=11 // pred_check_branch
        %352 = sbr.rel (%p350) target = $region32
      $region31: #{tpu_custom_call.1} parent=11 // pred_region
        _
      $region32: #{tpu_custom_call.1} parent=11 // pred_fallthru
        _
      // Predicated region
      $region33: #{tpu_custom_call.1} parent=11 // pred_check
        %p353 = pneg %p171
      $region34: #{tpu_custom_call.1} parent=11 // pred_check_branch
        %355 = sbr.rel (%p353) target = $region36
      $region35: #{tpu_custom_call.1} parent=11 // pred_region
        _
      $region36: #{tpu_custom_call.1} parent=11 // pred_fallthru
        _
      // Predicated region
      $region37: #{tpu_custom_call.1} parent=11 // pred_check
        %p356 = pneg %p192
      $region38: #{tpu_custom_call.1} parent=11 // pred_check_branch
        %358 = sbr.rel (%p356) target = $region40
      $region39: #{tpu_custom_call.1} parent=11 // pred_region
        _
      $region40: #{tpu_custom_call.1} parent=11 // pred_fallthru
        _
      // Predicated region
      $region41: #{tpu_custom_call.1} parent=11 // pred_check
        %p359 = pneg %p213
      $region42: #{tpu_custom_call.1} parent=11 // pred_check_branch
        %361 = sbr.rel (%p359) target = $region44
      $region43: #{tpu_custom_call.1} parent=11 // pred_region
        _
      $region44: #{tpu_custom_call.1} parent=11 // pred_fallthru
        _
      // Predicated region
      $region45: #{tpu_custom_call.1} parent=11 // pred_check
        %p362 = pneg %p234
      $region46: #{tpu_custom_call.1} parent=11 // pred_check_branch
        %364 = sbr.rel (%p362) target = $region48
      $region47: #{tpu_custom_call.1} parent=11 // pred_region
        _
      $region48: #{tpu_custom_call.1} parent=11 // pred_fallthru
        _
      // Predicated region
      $region49: #{tpu_custom_call.1} parent=11 // pred_check
        %p365 = pneg %p255
      $region50: #{tpu_custom_call.1} parent=11 // pred_check_branch
        %367 = sbr.rel (%p365) target = $region52
      $region51: #{tpu_custom_call.1} parent=11 // pred_region
        _
      $region52: #{tpu_custom_call.1} parent=11 // pred_fallthru
        _
      // Predicated region
      $region53: #{tpu_custom_call.1} parent=11 // pred_check
        %p368 = pneg %p276
      $region54: #{tpu_custom_call.1} parent=11 // pred_check_branch
        %370 = sbr.rel (%p368) target = $region56
      $region55: #{tpu_custom_call.1} parent=11 // pred_region
        _
      $region56: #{tpu_custom_call.1} parent=11 // pred_fallthru
        _
      // Predicated region
      $region57: #{tpu_custom_call.1} parent=11 // pred_check
        %p371 = pneg %p297
      $region58: #{tpu_custom_call.1} parent=11 // pred_check_branch
        %373 = sbr.rel (%p371) target = $region60
      $region59: #{tpu_custom_call.1} parent=11 // pred_region
        _
      $region60: #{tpu_custom_call.1} parent=11 // pred_fallthru
        _
    $region12: #{tpu_custom_call.1} parent=5 // pred_fallthru
      _
    %p374 = scmp.lt.s32.totalorder %s19, 2
    // Predicated region
    $region61: #{tpu_custom_call.1} parent=5 // pred_check
      %p375 = pneg %p374
    $region62: #{tpu_custom_call.1} parent=5 // pred_check_branch
      %377 = sbr.rel (%p375) target = $region64
    $region63: #{tpu_custom_call.1} parent=5 // pred_region
      // Predicated region
      $region65: #{tpu_custom_call.1} parent=63 // pred_check
        %p378 = pneg %p39
      $region66: #{tpu_custom_call.1} parent=63 // pred_check_branch
        %380 = sbr.rel (%p378) target = $region68
      $region67: #{tpu_custom_call.1} parent=63 // pred_region
        %p381 = scmp.lt.s32.totalorder %s19, 1
        %s382 = scalar_select %p381, %s19, 1
        %s383 = smul.addr %s382, 2
        %s384 = smul.addr %s383, 8
        %s385 = scalar_lea.vmem %s0, %s384
      $region68: #{tpu_custom_call.1} parent=63 // pred_fallthru
        _
    $region64: #{tpu_custom_call.1} parent=5 // pred_fallthru
      _
    %p386 = scmp.le.s32.totalorder 1, %s19
    %p387 = scmp.lt.s32.totalorder %s19, 3
    %p388 = pnand %p386, %p387
    %p389 = pneg %p388
    // Predicated region
    $region69: #{tpu_custom_call.1} parent=5 // pred_check
      _
    $region70: #{tpu_custom_call.1} parent=5 // pred_check_branch
      %391 = sbr.rel (%p388) target = $region72
    $region71: #{tpu_custom_call.1} parent=5 // pred_region
      %s392 = ssub.s32 %s19, 1
      %p393 = scmp.lt.s32.totalorder %s24, 1
      %s394 = scalar_select %p393, %s24, 1
      %s395 = smul.addr %s394, 2
      %s396 = smul.addr %s395, 8
      %s397 = scalar_lea.vmem %s0, %s396
      %p398 = pneg %p45
      %p399 = pneg %p42
      %p400 = pneg %p66
      %p401 = pneg %p63
      %p402 = pneg %p87
      %p403 = pneg %p84
      %p404 = pneg %p108
      %p405 = pneg %p105
      %p406 = pneg %p129
      %p407 = pneg %p126
      %p408 = pneg %p150
      %p409 = pneg %p147
      %p410 = pneg %p171
      %p411 = pneg %p168
      %p412 = pneg %p192
      %p413 = pneg %p189
      %p414 = pneg %p213
      %p415 = pneg %p210
      %p416 = pneg %p234
      %p417 = pneg %p231
      %p418 = pneg %p255
      %p419 = pneg %p252
      %p420 = pneg %p276
      %p421 = pneg %p273
      %p422 = pneg %p297
      %p423 = pneg %p294
      %p424 = pneg %p323
      %p425 = pneg %p320
      %p426 = scmp.lt.s32.totalorder %s24, 1
      %s427 = scalar_select %p426, %s24, 1
      %s428 = smul.addr %s427, 2
      %s429 = smul.addr %s428, 8
      %s430 = scalar_lea.vmem %s13, %s429
      %p431 = scmp.lt.s32.totalorder %s24, 1
      %s432 = scalar_select %p431, %s24, 1
      %s433 = smul.addr %s432, 2
      %s434 = smul.addr %s433, 8
      %s435 = scalar_lea.vmem %s0, %s434
      %p436 = scmp.lt.s32.totalorder %s24, 1
      %s437 = scalar_select %p436, %s24, 1
      %s438 = smul.addr %s437, 2
      %s439 = smul.addr %s438, 8
      %s440 = scalar_lea.vmem %s13, %s439
      %v441 = vld [vmem:[%s435] sm:$0xff]
      %v442 = vld [vmem:[%s435 + $0x8] sm:$0x3]
      %v443 = vld [vmem:[%s1] sm:$0xff]
      %v444 = vld [vmem:[%s1 + $0x8] sm:$0xff]
      %v445 = vld [vmem:[%s1 + $0x10] sm:$0xff]
      %v446 = vld [vmem:[%s1 + $0x18] sm:$0xff]
      %v447 = vld [vmem:[%s2] sm:$0x1]
      %v449 = vlaneseq
      %v450 = vshrl.u32 %v449, 7
      %v451 = vsub.s32 0, %v450
      %v452 = vrot.slane %v447, %v451
      %vm454 = vcmask 261120
      %v456 = vsel %vm454, %v441, 0
      %v459 = vsel %vm454, %v442, 0
      %461 = vmatprep.subr.mxu0 0.0
      %462 = vmatpush1.msra.mxu0 0.0
      %463 = vmatprep.subr.mxu0 0.0
      %464 = vmatpush1.msra.mxu0 0.0
      %465 = vmatprep.subr.mxu0 0.0
      %466 = vmatpush1.msra.mxu0 0.0
      %467 = vmatprep.subr.mxu0 0.0
      %468 = vmatpush1.msra.mxu0 0.0
      %469 = vmatprep.subr.mxu0 0.0
      %470 = vmatpush1.msra.mxu0 0.0
      %471 = vmatprep.subr.mxu0 0.0
      %472 = vmatpush1.msra.mxu0 0.0
      %473 = vmatprep.subr.mxu0 0.0
      %474 = vmatpush1.msra.mxu0 0.0
      %475 = vmatprep.subr.mxu0 0.0
      %476 = vmatpush1.msra.mxu0 0.0
      %477 = vmatprep.subr.mxu0 0.0
      %478 = vmatpush1.msra.mxu0 0.0
      %479 = vmatprep.subr.mxu0 0.0
      %480 = vmatpush1.msra.mxu0 0.0
      %481 = vmatprep.subr.mxu0 0.0
      %482 = vmatpush1.msra.mxu0 0.0
      %483 = vmatprep.subr.mxu0 0.0
      %484 = vmatpush1.msra.mxu0 0.0
      %485 = vmatprep.subr.mxu0 0.0
      %486 = vmatpush1.msra.mxu0 %v446
      %487 = vmatprep.subr.mxu0 0.0
      %488 = vmatpush1.msra.mxu0 %v445
      %489 = vmatprep.subr.mxu0 0.0
      %490 = vmatpush1.msra.mxu0 %v444
      %491 = vmatprep.subr.mxu0 0.0
      %492 = vmatpush1.msra.mxu0 %v443
      %493 = vmatprep.subr.mxu0 0.0
      %494 = vmatpush2.msra.mxu0 0.0
      %495 = vmatprep.subr.mxu0 0.0
      %496 = vmatpush2.msra.mxu0 0.0
      %497 = vmatprep.subr.mxu0 0.0
      %498 = vmatpush2.msra.mxu0 0.0
      %499 = vmatprep.subr.mxu0 0.0
      %500 = vmatpush2.msra.mxu0 0.0
      %501 = vmatprep.subr.mxu0 0.0
      %502 = vmatpush2.msra.mxu0 0.0
      %503 = vmatprep.subr.mxu0 0.0
      %504 = vmatpush2.msra.mxu0 0.0
      %505 = vmatprep.subr.mxu0 0.0
      %506 = vmatpush2.msra.mxu0 0.0
      %507 = vmatprep.subr.mxu0 0.0
      %508 = vmatpush2.msra.mxu0 0.0
      %509 = vmatprep.subr.mxu0 0.0
      %510 = vmatpush2.msra.mxu0 0.0
      %511 = vmatprep.subr.mxu0 0.0
      %512 = vmatpush2.msra.mxu0 0.0
      %513 = vmatprep.subr.mxu0 0.0
      %514 = vmatpush2.msra.mxu0 0.0
      %515 = vmatprep.subr.mxu0 0.0
      %516 = vmatpush2.msra.mxu0 0.0
      %517 = vmatprep.subr.mxu0 0.0
      %518 = vmatpush2.msra.mxu0 0.0
      %519 = vmatprep.subr.mxu0 0.0
      %520 = vmatpush2.msra.mxu0 0.0
      %521 = vmatprep.subr.mxu0 0.0
      %522 = vmatpush2.msra.mxu0 0.0
      %523 = vmatprep.subr.mxu0 0.0
      %524 = vmatpush2.msra.mxu0 0.0
      %525 = vmatprep.mubr.f32.mxu0 0.0
      %526 = vmatmul.mubr.f32.gmra.mxu0 %v456
      %v527 = vpop.f32.mrf.mxu0
      %v528 = vadd.f32 %v452, %v527
      %v529 = vpop.f32.mrf.mxu0
      %530 = vmatprep.mubr.f32.mxu0 0.0
      %531 = vmatmul.mubr.f32.gmra.mxu0 %v459
      %v532 = vpop.f32.mrf.mxu0
      %v533 = vadd.f32 %v452, %v532
      %v534 = vpop.f32.mrf.mxu0
      %535 = vdwg.mxu0
      %v536 = vld [vmem:[%s3] sm:$0xff]
      %v537 = vld [vmem:[%s3 + $0x8] sm:$0xff]
      %v538 = vld [vmem:[%s3 + $0x10] sm:$0xff]
      %v539 = vld [vmem:[%s3 + $0x18] sm:$0xff]
      %v540 = vld [vmem:[%s4] sm:$0x1]
      %v541 = vmul.f32 %v528, 0.35355338
      %v542 = vmul.f32 %v533, 0.35355338
      %545 = vrot.lane.b32.xlu0 %v528, 96
      %v546 = vpop.permute.xlu0 %545
      %547 = vrot.lane.b32.xlu0 %v533, 96
      %v548 = vpop.permute.xlu0 %547
      %vm549 = vcmask 64512
      %v551 = vsel %vm549, %v541, 0
      %v554 = vsel %vm549, %v542, 0
      %v556 = vsel %vm549, %v546, 0
      %v558 = vsel %vm549, %v548, 0
      %560 = vmatprep.subr.mxu0 0.0
      %561 = vmatpush1.xpose.msra.mxu0 0.0
      %562 = vmatprep.subr.mxu0 0.0
      %563 = vmatpush1.xpose.msra.mxu0 0.0
      %564 = vmatprep.subr.mxu0 0.0
      %565 = vmatpush1.xpose.msra.mxu0 0.0
      %566 = vmatprep.subr.mxu0 0.0
      %567 = vmatpush1.xpose.msra.mxu0 0.0
      %568 = vmatprep.subr.mxu0 0.0
      %569 = vmatpush1.xpose.msra.mxu0 0.0
      %570 = vmatprep.subr.mxu0 0.0
      %571 = vmatpush1.xpose.msra.mxu0 0.0
      %572 = vmatprep.subr.mxu0 0.0
      %573 = vmatpush1.xpose.msra.mxu0 0.0
      %574 = vmatprep.subr.mxu0 0.0
      %575 = vmatpush1.xpose.msra.mxu0 0.0
      %576 = vmatprep.subr.mxu0 0.0
      %577 = vmatpush1.xpose.msra.mxu0 0.0
      %578 = vmatprep.subr.mxu0 0.0
      %579 = vmatpush1.xpose.msra.mxu0 0.0
      %580 = vmatprep.subr.mxu0 0.0
      %581 = vmatpush1.xpose.msra.mxu0 0.0
      %582 = vmatprep.subr.mxu0 0.0
      %583 = vmatpush1.xpose.msra.mxu0 0.0
      %584 = vmatprep.subr.mxu0 0.0
      %585 = vmatpush1.xpose.msra.mxu0 0.0
      %586 = vmatprep.subr.mxu0 0.0
      %587 = vmatpush1.xpose.msra.mxu0 0.0
      %588 = vmatprep.subr.mxu0 0.0
      %589 = vmatpush1.xpose.msra.mxu0 %v558
      %590 = vmatprep.subr.mxu0 0.0
      %591 = vmatpush1.xpose.msra.mxu0 %v556
      %592 = vmatprep.subr.mxu0 0.0
      %593 = vmatpush2.xpose.msra.mxu0 0.0
      %594 = vmatprep.subr.mxu0 0.0
      %595 = vmatpush2.xpose.msra.mxu0 0.0
      %596 = vmatprep.subr.mxu0 0.0
      %597 = vmatpush2.xpose.msra.mxu0 0.0
      %598 = vmatprep.subr.mxu0 0.0
      %599 = vmatpush2.xpose.msra.mxu0 0.0
      %600 = vmatprep.subr.mxu0 0.0
      %601 = vmatpush2.xpose.msra.mxu0 0.0
      %602 = vmatprep.subr.mxu0 0.0
      %603 = vmatpush2.xpose.msra.mxu0 0.0
      %604 = vmatprep.subr.mxu0 0.0
      %605 = vmatpush2.xpose.msra.mxu0 0.0
      %606 = vmatprep.subr.mxu0 0.0
      %607 = vmatpush2.xpose.msra.mxu0 0.0
      %608 = vmatprep.subr.mxu0 0.0
      %609 = vmatpush2.xpose.msra.mxu0 0.0
      %610 = vmatprep.subr.mxu0 0.0
      %611 = vmatpush2.xpose.msra.mxu0 0.0
      %612 = vmatprep.subr.mxu0 0.0
      %613 = vmatpush2.xpose.msra.mxu0 0.0
      %614 = vmatprep.subr.mxu0 0.0
      %615 = vmatpush2.xpose.msra.mxu0 0.0
      %616 = vmatprep.subr.mxu0 0.0
      %617 = vmatpush2.xpose.msra.mxu0 0.0
      %618 = vmatprep.subr.mxu0 0.0
      %619 = vmatpush2.xpose.msra.mxu0 0.0
      %620 = vmatprep.subr.mxu0 0.0
      %621 = vmatpush2.xpose.msra.mxu0 0.0
      %622 = vmatprep.subr.mxu0 0.0
      %623 = vmatpush2.xpose.msra.mxu0 0.0
      %624 = vmatprep.mubr.f32.mxu0 0.0
      %625 = vmatmul.mubr.f32.gmra.mxu0 %v551
      %v626 = vpop.f32.mrf.mxu0
      %v627 = vadd.f32 0.0, %v626
      %v628 = vpop.f32.mrf.mxu0
      %629 = vmatprep.mubr.f32.mxu0 0.0
      %630 = vmatmul.mubr.f32.gmra.mxu0 %v554
      %v631 = vpop.f32.mrf.mxu0
      %v632 = vadd.f32 0.0, %v631
      %v633 = vpop.f32.mrf.mxu0
      %634 = vdwg.mxu0
      %vm635 = vcmask 80896
      %v636 = vsel %vm635, %v627, -inf
      %637 = vmax.xlane.f32.xlu0 %v636
      %v638 = vpop.xlane.xlu0 %637
      %vm639 = vcmask 74752
      %v640 = vsel %vm639, %v632, -inf
      %641 = vmax.xlane.f32.xlu0 %v640
      %v642 = vpop.xlane.xlu0 %641
      %v643 = vsub.f32 %v627, %v638
      %v644 = vsub.f32 %v632, %v642
      %v645 = vmul.f32 %v643, 1.442695
      %v646 = vpow.pop %v645
      %v647 = vmul.f32 %v644, 1.442695
      %v648 = vpow.pop %v647
      %v649 = vsel %vm635, %v646, 0.0
      %650 = vadd.xlane.f32.xlu0 %v649
      %v651 = vpop.xlane.xlu0 %650
      %v652 = vsel %vm639, %v648, 0.0
      %653 = vadd.xlane.f32.xlu0 %v652
      %v654 = vpop.xlane.xlu0 %653
      %v655 = vrcp.pop %v651
      %v656 = vrcp.pop %v654
      %v657 = vmul.f32 %v646, %v655
      %v658 = vmul.f32 %v648, %v656
      %659 = vrot.lane.b32.xlu0 %v528, 64
      %v660 = vpop.permute.xlu0 %659
      %661 = vrot.lane.b32.xlu0 %v533, 64
      %v662 = vpop.permute.xlu0 %661
      %v665 = vsel %vm635, %v657, 0
      %v668 = vsel %vm635, %v658, 0
      %vm670 = vcmask 1041408
      %v671 = vsel %vm670, %v662, 0
      %673 = vmatprep.subr.mxu0 0.0
      %674 = vmatpush1.msra.mxu0 0.0
      %675 = vmatprep.subr.mxu0 0.0
      %676 = vmatpush1.msra.mxu0 0.0
      %677 = vmatprep.subr.mxu0 0.0
      %678 = vmatpush1.msra.mxu0 0.0
      %679 = vmatprep.subr.mxu0 0.0
      %680 = vmatpush1.msra.mxu0 0.0
      %681 = vmatprep.subr.mxu0 0.0
      %682 = vmatpush1.msra.mxu0 0.0
      %683 = vmatprep.subr.mxu0 0.0
      %684 = vmatpush1.msra.mxu0 0.0
      %685 = vmatprep.subr.mxu0 0.0
      %686 = vmatpush1.msra.mxu0 0.0
      %687 = vmatprep.subr.mxu0 0.0
      %688 = vmatpush1.msra.mxu0 0.0
      %689 = vmatprep.subr.mxu0 0.0
      %690 = vmatpush1.msra.mxu0 0.0
      %691 = vmatprep.subr.mxu0 0.0
      %692 = vmatpush1.msra.mxu0 0.0
      %693 = vmatprep.subr.mxu0 0.0
      %694 = vmatpush1.msra.mxu0 0.0
      %695 = vmatprep.subr.mxu0 0.0
      %696 = vmatpush1.msra.mxu0 0.0
      %697 = vmatprep.subr.mxu0 0.0
      %698 = vmatpush1.msra.mxu0 0.0
      %699 = vmatprep.subr.mxu0 0.0
      %700 = vmatpush1.msra.mxu0 0.0
      %701 = vmatprep.subr.mxu0 0.0
      %702 = vmatpush1.msra.mxu0 %v671
      %703 = vmatprep.subr.mxu0 0.0
      %704 = vmatpush1.msra.mxu0 %v660
      %705 = vmatprep.subr.mxu0 0.0
      %706 = vmatpush2.msra.mxu0 0.0
      %707 = vmatprep.subr.mxu0 0.0
      %708 = vmatpush2.msra.mxu0 0.0
      %709 = vmatprep.subr.mxu0 0.0
      %710 = vmatpush2.msra.mxu0 0.0
      %711 = vmatprep.subr.mxu0 0.0
      %712 = vmatpush2.msra.mxu0 0.0
      %713 = vmatprep.subr.mxu0 0.0
      %714 = vmatpush2.msra.mxu0 0.0
      %715 = vmatprep.subr.mxu0 0.0
      %716 = vmatpush2.msra.mxu0 0.0
      %717 = vmatprep.subr.mxu0 0.0
      %718 = vmatpush2.msra.mxu0 0.0
      %719 = vmatprep.subr.mxu0 0.0
      %720 = vmatpush2.msra.mxu0 0.0
      %721 = vmatprep.subr.mxu0 0.0
      %722 = vmatpush2.msra.mxu0 0.0
      %723 = vmatprep.subr.mxu0 0.0
      %724 = vmatpush2.msra.mxu0 0.0
      %725 = vmatprep.subr.mxu0 0.0
      %726 = vmatpush2.msra.mxu0 0.0
      %727 = vmatprep.subr.mxu0 0.0
      %728 = vmatpush2.msra.mxu0 0.0
      %729 = vmatprep.subr.mxu0 0.0
      %730 = vmatpush2.msra.mxu0 0.0
      %731 = vmatprep.subr.mxu0 0.0
      %732 = vmatpush2.msra.mxu0 0.0
      %733 = vmatprep.subr.mxu0 0.0
      %734 = vmatpush2.msra.mxu0 0.0
      %735 = vmatprep.subr.mxu0 0.0
      %736 = vmatpush2.msra.mxu0 0.0
      %737 = vmatprep.mubr.f32.mxu0 0.0
      %738 = vmatmul.mubr.f32.gmra.mxu0 %v665
      %v739 = vpop.f32.mrf.mxu0
      %v740 = vadd.f32 0.0, %v739
      %v741 = vpop.f32.mrf.mxu0
      %742 = vmatprep.mubr.f32.mxu0 0.0
      %743 = vmatmul.mubr.f32.gmra.mxu0 %v668
      %v744 = vpop.f32.mrf.mxu0
      %v745 = vadd.f32 0.0, %v744
      %v746 = vpop.f32.mrf.mxu0
      %747 = vdwg.mxu0
      %748 = vrot.lane.b32.xlu0 %v541, 120
      %v749 = vpop.permute.xlu0 %748
      %750 = vrot.lane.b32.xlu0 %v542, 120
      %v751 = vpop.permute.xlu0 %750
      %752 = vrot.lane.b32.xlu0 %v528, 88
      %v753 = vpop.permute.xlu0 %752
      %754 = vrot.lane.b32.xlu0 %v533, 88
      %v755 = vpop.permute.xlu0 %754
      %v756 = vsel %vm549, %v749, 0
      %v758 = vsel %vm549, %v751, 0
      %v760 = vsel %vm549, %v753, 0
      %v762 = vsel %vm549, %v755, 0
      %764 = vmatprep.subr.mxu0 0.0
      %765 = vmatpush1.xpose.msra.mxu0 0.0
      %766 = vmatprep.subr.mxu0 0.0
      %767 = vmatpush1.xpose.msra.mxu0 0.0
      %768 = vmatprep.subr.mxu0 0.0
      %769 = vmatpush1.xpose.msra.mxu0 0.0
      %770 = vmatprep.subr.mxu0 0.0
      %771 = vmatpush1.xpose.msra.mxu0 0.0
      %772 = vmatprep.subr.mxu0 0.0
      %773 = vmatpush1.xpose.msra.mxu0 0.0
      %774 = vmatprep.subr.mxu0 0.0
      %775 = vmatpush1.xpose.msra.mxu0 0.0
      %776 = vmatprep.subr.mxu0 0.0
      %777 = vmatpush1.xpose.msra.mxu0 0.0
      %778 = vmatprep.subr.mxu0 0.0
      %779 = vmatpush1.xpose.msra.mxu0 0.0
      %780 = vmatprep.subr.mxu0 0.0
      %781 = vmatpush1.xpose.msra.mxu0 0.0
      %782 = vmatprep.subr.mxu0 0.0
      %783 = vmatpush1.xpose.msra.mxu0 0.0
      %784 = vmatprep.subr.mxu0 0.0
      %785 = vmatpush1.xpose.msra.mxu0 0.0
      %786 = vmatprep.subr.mxu0 0.0
      %787 = vmatpush1.xpose.msra.mxu0 0.0
      %788 = vmatprep.subr.mxu0 0.0
      %789 = vmatpush1.xpose.msra.mxu0 0.0
      %790 = vmatprep.subr.mxu0 0.0
      %791 = vmatpush1.xpose.msra.mxu0 0.0
      %792 = vmatprep.subr.mxu0 0.0
      %793 = vmatpush1.xpose.msra.mxu0 %v762
      %794 = vmatprep.subr.mxu0 0.0
      %795 = vmatpush1.xpose.msra.mxu0 %v760
      %796 = vmatprep.subr.mxu0 0.0
      %797 = vmatpush2.xpose.msra.mxu0 0.0
      %798 = vmatprep.subr.mxu0 0.0
      %799 = vmatpush2.xpose.msra.mxu0 0.0
      %800 = vmatprep.subr.mxu0 0.0
      %801 = vmatpush2.xpose.msra.mxu0 0.0
      %802 = vmatprep.subr.mxu0 0.0
      %803 = vmatpush2.xpose.msra.mxu0 0.0
      %804 = vmatprep.subr.mxu0 0.0
      %805 = vmatpush2.xpose.msra.mxu0 0.0
      %806 = vmatprep.subr.mxu0 0.0
      %807 = vmatpush2.xpose.msra.mxu0 0.0
      %808 = vmatprep.subr.mxu0 0.0
      %809 = vmatpush2.xpose.msra.mxu0 0.0
      %810 = vmatprep.subr.mxu0 0.0
      %811 = vmatpush2.xpose.msra.mxu0 0.0
      %812 = vmatprep.subr.mxu0 0.0
      %813 = vmatpush2.xpose.msra.mxu0 0.0
      %814 = vmatprep.subr.mxu0 0.0
      %815 = vmatpush2.xpose.msra.mxu0 0.0
      %816 = vmatprep.subr.mxu0 0.0
      %817 = vmatpush2.xpose.msra.mxu0 0.0
      %818 = vmatprep.subr.mxu0 0.0
      %819 = vmatpush2.xpose.msra.mxu0 0.0
      %820 = vmatprep.subr.mxu0 0.0
      %821 = vmatpush2.xpose.msra.mxu0 0.0
      %822 = vmatprep.subr.mxu0 0.0
      %823 = vmatpush2.xpose.msra.mxu0 0.0
      %824 = vmatprep.subr.mxu0 0.0
      %825 = vmatpush2.xpose.msra.mxu0 0.0
      %826 = vmatprep.subr.mxu0 0.0
      %827 = vmatpush2.xpose.msra.mxu0 0.0
      %828 = vmatprep.mubr.f32.mxu0 0.0
      %829 = vmatmul.mubr.f32.gmra.mxu0 %v756
      %v830 = vpop.f32.mrf.mxu0
      %v831 = vadd.f32 0.0, %v830
      %v832 = vpop.f32.mrf.mxu0
      %833 = vmatprep.mubr.f32.mxu0 0.0
      %834 = vmatmul.mubr.f32.gmra.mxu0 %v758
      %v835 = vpop.f32.mrf.mxu0
      %v836 = vadd.f32 0.0, %v835
      %v837 = vpop.f32.mrf.mxu0
      %838 = vdwg.mxu0
      %v839 = vsel %vm635, %v831, -inf
      %840 = vmax.xlane.f32.xlu0 %v839
      %v841 = vpop.xlane.xlu0 %840
      %v842 = vsel %vm639, %v836, -inf
      %843 = vmax.xlane.f32.xlu0 %v842
      %v844 = vpop.xlane.xlu0 %843
      %v845 = vsub.f32 %v831, %v841
      %v846 = vsub.f32 %v836, %v844
      %v847 = vmul.f32 %v845, 1.442695
      %v848 = vpow.pop %v847
      %v849 = vmul.f32 %v846, 1.442695
      %v850 = vpow.pop %v849
      %v851 = vsel %vm635, %v848, 0.0
      %852 = vadd.xlane.f32.xlu0 %v851
      %v853 = vpop.xlane.xlu0 %852
      %v854 = vsel %vm639, %v850, 0.0
      %855 = vadd.xlane.f32.xlu0 %v854
      %v856 = vpop.xlane.xlu0 %855
      %v857 = vrcp.pop %v853
      %v858 = vrcp.pop %v856
      %v859 = vmul.f32 %v848, %v857
      %v860 = vmul.f32 %v850, %v858
      %861 = vrot.lane.b32.xlu0 %v528, 56
      %v862 = vpop.permute.xlu0 %861
      %863 = vrot.lane.b32.xlu0 %v533, 56
      %v864 = vpop.permute.xlu0 %863
      %v867 = vsel %vm635, %v859, 0
      %v870 = vsel %vm635, %v860, 0
      %v872 = vsel %vm670, %v864, 0
      %874 = vmatprep.subr.mxu0 0.0
      %875 = vmatpush1.msra.mxu0 0.0
      %876 = vmatprep.subr.mxu0 0.0
      %877 = vmatpush1.msra.mxu0 0.0
      %878 = vmatprep.subr.mxu0 0.0
      %879 = vmatpush1.msra.mxu0 0.0
      %880 = vmatprep.subr.mxu0 0.0
      %881 = vmatpush1.msra.mxu0 0.0
      %882 = vmatprep.subr.mxu0 0.0
      %883 = vmatpush1.msra.mxu0 0.0
      %884 = vmatprep.subr.mxu0 0.0
      %885 = vmatpush1.msra.mxu0 0.0
      %886 = vmatprep.subr.mxu0 0.0
      %887 = vmatpush1.msra.mxu0 0.0
      %888 = vmatprep.subr.mxu0 0.0
      %889 = vmatpush1.msra.mxu0 0.0
      %890 = vmatprep.subr.mxu0 0.0
      %891 = vmatpush1.msra.mxu0 0.0
      %892 = vmatprep.subr.mxu0 0.0
      %893 = vmatpush1.msra.mxu0 0.0
      %894 = vmatprep.subr.mxu0 0.0
      %895 = vmatpush1.msra.mxu0 0.0
      %896 = vmatprep.subr.mxu0 0.0
      %897 = vmatpush1.msra.mxu0 0.0
      %898 = vmatprep.subr.mxu0 0.0
      %899 = vmatpush1.msra.mxu0 0.0
      %900 = vmatprep.subr.mxu0 0.0
      %901 = vmatpush1.msra.mxu0 0.0
      %902 = vmatprep.subr.mxu0 0.0
      %903 = vmatpush1.msra.mxu0 %v872
      %904 = vmatprep.subr.mxu0 0.0
      %905 = vmatpush1.msra.mxu0 %v862
      %906 = vmatprep.subr.mxu0 0.0
      %907 = vmatpush2.msra.mxu0 0.0
      %908 = vmatprep.subr.mxu0 0.0
      %909 = vmatpush2.msra.mxu0 0.0
      %910 = vmatprep.subr.mxu0 0.0
      %911 = vmatpush2.msra.mxu0 0.0
      %912 = vmatprep.subr.mxu0 0.0
      %913 = vmatpush2.msra.mxu0 0.0
      %914 = vmatprep.subr.mxu0 0.0
      %915 = vmatpush2.msra.mxu0 0.0
      %916 = vmatprep.subr.mxu0 0.0
      %917 = vmatpush2.msra.mxu0 0.0
      %918 = vmatprep.subr.mxu0 0.0
      %919 = vmatpush2.msra.mxu0 0.0
      %920 = vmatprep.subr.mxu0 0.0
      %921 = vmatpush2.msra.mxu0 0.0
      %922 = vmatprep.subr.mxu0 0.0
      %923 = vmatpush2.msra.mxu0 0.0
      %924 = vmatprep.subr.mxu0 0.0
      %925 = vmatpush2.msra.mxu0 0.0
      %926 = vmatprep.subr.mxu0 0.0
      %927 = vmatpush2.msra.mxu0 0.0
      %928 = vmatprep.subr.mxu0 0.0
      %929 = vmatpush2.msra.mxu0 0.0
      %930 = vmatprep.subr.mxu0 0.0
      %931 = vmatpush2.msra.mxu0 0.0
      %932 = vmatprep.subr.mxu0 0.0
      %933 = vmatpush2.msra.mxu0 0.0
      %934 = vmatprep.subr.mxu0 0.0
      %935 = vmatpush2.msra.mxu0 0.0
      %936 = vmatprep.subr.mxu0 0.0
      %937 = vmatpush2.msra.mxu0 0.0
      %938 = vmatprep.mubr.f32.mxu0 0.0
      %939 = vmatmul.mubr.f32.gmra.mxu0 %v867
      %v940 = vpop.f32.mrf.mxu0
      %v941 = vadd.f32 0.0, %v940
      %v942 = vpop.f32.mrf.mxu0
      %943 = vmatprep.mubr.f32.mxu0 0.0
      %944 = vmatmul.mubr.f32.gmra.mxu0 %v870
      %v945 = vpop.f32.mrf.mxu0
      %v946 = vadd.f32 0.0, %v945
      %v947 = vpop.f32.mrf.mxu0
      %948 = vdwg.mxu0
      %v950 = vsel %vm549, %v941, 0
      %v953 = vsel %vm549, %v946, 0
      %955 = vmatprep.subr.mxu0 0.0
      %956 = vmatpush1.msra.mxu0 0.0
      %957 = vmatprep.subr.mxu0 0.0
      %958 = vmatpush1.msra.mxu0 0.0
      %959 = vmatprep.subr.mxu0 0.0
      %960 = vmatpush1.msra.mxu0 0.0
      %961 = vmatprep.subr.mxu0 0.0
      %962 = vmatpush1.msra.mxu0 0.0
      %963 = vmatprep.subr.mxu0 0.0
      %964 = vmatpush1.msra.mxu0 0.0
      %965 = vmatprep.subr.mxu0 0.0
      %966 = vmatpush1.msra.mxu0 0.0
      %967 = vmatprep.subr.mxu0 0.0
      %968 = vmatpush1.msra.mxu0 0.0
      %969 = vmatprep.subr.mxu0 0.0
      %970 = vmatpush1.msra.mxu0 0.0
      %971 = vmatprep.subr.mxu0 0.0
      %972 = vmatpush1.msra.mxu0 0.0
      %973 = vmatprep.subr.mxu0 0.0
      %974 = vmatpush1.msra.mxu0 0.0
      %975 = vmatprep.subr.mxu0 0.0
      %976 = vmatpush1.msra.mxu0 0.0
      %977 = vmatprep.subr.mxu0 0.0
      %978 = vmatpush1.msra.mxu0 0.0
      %979 = vmatprep.subr.mxu0 0.0
      %980 = vmatpush1.msra.mxu0 0.0
      %981 = vmatprep.subr.mxu0 0.0
      %982 = vmatpush1.msra.mxu0 0.0
      %983 = vmatprep.subr.mxu0 0.0
      %984 = vmatpush1.msra.mxu0 0.0
      %985 = vmatprep.subr.mxu0 0.0
      %986 = vmatpush1.msra.mxu0 %v537
      %987 = vmatprep.subr.mxu0 0.0
      %988 = vmatpush2.msra.mxu0 0.0
      %989 = vmatprep.subr.mxu0 0.0
      %990 = vmatpush2.msra.mxu0 0.0
      %991 = vmatprep.subr.mxu0 0.0
      %992 = vmatpush2.msra.mxu0 0.0
      %993 = vmatprep.subr.mxu0 0.0
      %994 = vmatpush2.msra.mxu0 0.0
      %995 = vmatprep.subr.mxu0 0.0
      %996 = vmatpush2.msra.mxu0 0.0
      %997 = vmatprep.subr.mxu0 0.0
      %998 = vmatpush2.msra.mxu0 0.0
      %999 = vmatprep.subr.mxu0 0.0
      %1000 = vmatpush2.msra.mxu0 0.0
      %1001 = vmatprep.subr.mxu0 0.0
      %1002 = vmatpush2.msra.mxu0 0.0
      %1003 = vmatprep.subr.mxu0 0.0
      %1004 = vmatpush2.msra.mxu0 0.0
      %1005 = vmatprep.subr.mxu0 0.0
      %1006 = vmatpush2.msra.mxu0 0.0
      %1007 = vmatprep.subr.mxu0 0.0
      %1008 = vmatpush2.msra.mxu0 0.0
      %1009 = vmatprep.subr.mxu0 0.0
      %1010 = vmatpush2.msra.mxu0 0.0
      %1011 = vmatprep.subr.mxu0 0.0
      %1012 = vmatpush2.msra.mxu0 0.0
      %1013 = vmatprep.subr.mxu0 0.0
      %1014 = vmatpush2.msra.mxu0 0.0
      %1015 = vmatprep.subr.mxu0 0.0
      %1016 = vmatpush2.msra.mxu0 0.0
      %1017 = vmatprep.subr.mxu0 0.0
      %1018 = vmatpush2.msra.mxu0 0.0
      %1019 = vmatprep.mubr.f32.mxu0 0.0
      %1020 = vmatmul.mubr.f32.gmra.mxu0 %v950
      %v1021 = vpop.f32.mrf.mxu0
      %v1022 = vadd.f32 0.0, %v1021
      %v1023 = vpop.f32.mrf.mxu0
      %1024 = vmatprep.mubr.f32.mxu0 0.0
      %1025 = vmatmul.mubr.f32.gmra.mxu0 %v953
      %v1026 = vpop.f32.mrf.mxu0
      %v1027 = vadd.f32 0.0, %v1026
      %v1028 = vpop.f32.mrf.mxu0
      %1029 = vdwg.mxu0
      %v1031 = vsel %vm549, %v740, 0
      %v1034 = vsel %vm549, %v745, 0
      %1036 = vmatprep.subr.mxu0 0.0
      %1037 = vmatpush1.msra.mxu0 0.0
      %1038 = vmatprep.subr.mxu0 0.0
      %1039 = vmatpush1.msra.mxu0 0.0
      %1040 = vmatprep.subr.mxu0 0.0
      %1041 = vmatpush1.msra.mxu0 0.0
      %1042 = vmatprep.subr.mxu0 0.0
      %1043 = vmatpush1.msra.mxu0 0.0
      %1044 = vmatprep.subr.mxu0 0.0
      %1045 = vmatpush1.msra.mxu0 0.0
      %1046 = vmatprep.subr.mxu0 0.0
      %1047 = vmatpush1.msra.mxu0 0.0
      %1048 = vmatprep.subr.mxu0 0.0
      %1049 = vmatpush1.msra.mxu0 0.0
      %1050 = vmatprep.subr.mxu0 0.0
      %1051 = vmatpush1.msra.mxu0 0.0
      %1052 = vmatprep.subr.mxu0 0.0
      %1053 = vmatpush1.msra.mxu0 0.0
      %1054 = vmatprep.subr.mxu0 0.0
      %1055 = vmatpush1.msra.mxu0 0.0
      %1056 = vmatprep.subr.mxu0 0.0
      %1057 = vmatpush1.msra.mxu0 0.0
      %1058 = vmatprep.subr.mxu0 0.0
      %1059 = vmatpush1.msra.mxu0 0.0
      %1060 = vmatprep.subr.mxu0 0.0
      %1061 = vmatpush1.msra.mxu0 0.0
      %1062 = vmatprep.subr.mxu0 0.0
      %1063 = vmatpush1.msra.mxu0 0.0
      %1064 = vmatprep.subr.mxu0 0.0
      %1065 = vmatpush1.msra.mxu0 0.0
      %1066 = vmatprep.subr.mxu0 0.0
      %1067 = vmatpush1.msra.mxu0 %v536
      %1068 = vmatprep.subr.mxu0 0.0
      %1069 = vmatpush2.msra.mxu0 0.0
      %1070 = vmatprep.subr.mxu0 0.0
      %1071 = vmatpush2.msra.mxu0 0.0
      %1072 = vmatprep.subr.mxu0 0.0
      %1073 = vmatpush2.msra.mxu0 0.0
      %1074 = vmatprep.subr.mxu0 0.0
      %1075 = vmatpush2.msra.mxu0 0.0
      %1076 = vmatprep.subr.mxu0 0.0
      %1077 = vmatpush2.msra.mxu0 0.0
      %1078 = vmatprep.subr.mxu0 0.0
      %1079 = vmatpush2.msra.mxu0 0.0
      %1080 = vmatprep.subr.mxu0 0.0
      %1081 = vmatpush2.msra.mxu0 0.0
      %1082 = vmatprep.subr.mxu0 0.0
      %1083 = vmatpush2.msra.mxu0 0.0
      %1084 = vmatprep.subr.mxu0 0.0
      %1085 = vmatpush2.msra.mxu0 0.0
      %1086 = vmatprep.subr.mxu0 0.0
      %1087 = vmatpush2.msra.mxu0 0.0
      %1088 = vmatprep.subr.mxu0 0.0
      %1089 = vmatpush2.msra.mxu0 0.0
      %1090 = vmatprep.subr.mxu0 0.0
      %1091 = vmatpush2.msra.mxu0 0.0
      %1092 = vmatprep.subr.mxu0 0.0
      %1093 = vmatpush2.msra.mxu0 0.0
      %1094 = vmatprep.subr.mxu0 0.0
      %1095 = vmatpush2.msra.mxu0 0.0
      %1096 = vmatprep.subr.mxu0 0.0
      %1097 = vmatpush2.msra.mxu0 0.0
      %1098 = vmatprep.subr.mxu0 0.0
      %1099 = vmatpush2.msra.mxu0 0.0
      %1100 = vmatprep.mubr.f32.mxu0 0.0
      %1101 = vmatmul.mubr.f32.gmra.mxu0 %v1031
      %v1102 = vpop.f32.mrf.mxu0
      %v1103 = vadd.f32 %v1022, %v1102
      %v1104 = vpop.f32.mrf.mxu0
      %1105 = vmatprep.mubr.f32.mxu0 0.0
      %1106 = vmatmul.mubr.f32.gmra.mxu0 %v1034
      %v1107 = vpop.f32.mrf.mxu0
      %v1108 = vadd.f32 %v1027, %v1107
      %v1109 = vpop.f32.mrf.mxu0
      %1110 = vdwg.mxu0
      %1111 = vrot.lane.b32.xlu0 %v541, 112
      %v1112 = vpop.permute.xlu0 %1111
      %1113 = vrot.lane.b32.xlu0 %v542, 112
      %v1114 = vpop.permute.xlu0 %1113
      %1115 = vrot.lane.b32.xlu0 %v528, 80
      %v1116 = vpop.permute.xlu0 %1115
      %1117 = vrot.lane.b32.xlu0 %v533, 80
      %v1118 = vpop.permute.xlu0 %1117
      %v1119 = vsel %vm549, %v1112, 0
      %v1121 = vsel %vm549, %v1114, 0
      %v1123 = vsel %vm549, %v1116, 0
      %v1125 = vsel %vm549, %v1118, 0
      %1127 = vmatprep.subr.mxu0 0.0
      %1128 = vmatpush1.xpose.msra.mxu0 0.0
      %1129 = vmatprep.subr.mxu0 0.0
      %1130 = vmatpush1.xpose.msra.mxu0 0.0
      %1131 = vmatprep.subr.mxu0 0.0
      %1132 = vmatpush1.xpose.msra.mxu0 0.0
      %1133 = vmatprep.subr.mxu0 0.0
      %1134 = vmatpush1.xpose.msra.mxu0 0.0
      %1135 = vmatprep.subr.mxu0 0.0
      %1136 = vmatpush1.xpose.msra.mxu0 0.0
      %1137 = vmatprep.subr.mxu0 0.0
      %1138 = vmatpush1.xpose.msra.mxu0 0.0
      %1139 = vmatprep.subr.mxu0 0.0
      %1140 = vmatpush1.xpose.msra.mxu0 0.0
      %1141 = vmatprep.subr.mxu0 0.0
      %1142 = vmatpush1.xpose.msra.mxu0 0.0
      %1143 = vmatprep.subr.mxu0 0.0
      %1144 = vmatpush1.xpose.msra.mxu0 0.0
      %1145 = vmatprep.subr.mxu0 0.0
      %1146 = vmatpush1.xpose.msra.mxu0 0.0
      %1147 = vmatprep.subr.mxu0 0.0
      %1148 = vmatpush1.xpose.msra.mxu0 0.0
      %1149 = vmatprep.subr.mxu0 0.0
      %1150 = vmatpush1.xpose.msra.mxu0 0.0
      %1151 = vmatprep.subr.mxu0 0.0
      %1152 = vmatpush1.xpose.msra.mxu0 0.0
      %1153 = vmatprep.subr.mxu0 0.0
      %1154 = vmatpush1.xpose.msra.mxu0 0.0
      %1155 = vmatprep.subr.mxu0 0.0
      %1156 = vmatpush1.xpose.msra.mxu0 %v1125
      %1157 = vmatprep.subr.mxu0 0.0
      %1158 = vmatpush1.xpose.msra.mxu0 %v1123
      %1159 = vmatprep.subr.mxu0 0.0
      %1160 = vmatpush2.xpose.msra.mxu0 0.0
      %1161 = vmatprep.subr.mxu0 0.0
      %1162 = vmatpush2.xpose.msra.mxu0 0.0
      %1163 = vmatprep.subr.mxu0 0.0
      %1164 = vmatpush2.xpose.msra.mxu0 0.0
      %1165 = vmatprep.subr.mxu0 0.0
      %1166 = vmatpush2.xpose.msra.mxu0 0.0
      %1167 = vmatprep.subr.mxu0 0.0
      %1168 = vmatpush2.xpose.msra.mxu0 0.0
      %1169 = vmatprep.subr.mxu0 0.0
      %1170 = vmatpush2.xpose.msra.mxu0 0.0
      %1171 = vmatprep.subr.mxu0 0.0
      %1172 = vmatpush2.xpose.msra.mxu0 0.0
      %1173 = vmatprep.subr.mxu0 0.0
      %1174 = vmatpush2.xpose.msra.mxu0 0.0
      %1175 = vmatprep.subr.mxu0 0.0
      %1176 = vmatpush2.xpose.msra.mxu0 0.0
      %1177 = vmatprep.subr.mxu0 0.0
      %1178 = vmatpush2.xpose.msra.mxu0 0.0
      %1179 = vmatprep.subr.mxu0 0.0
      %1180 = vmatpush2.xpose.msra.mxu0 0.0
      %1181 = vmatprep.subr.mxu0 0.0
      %1182 = vmatpush2.xpose.msra.mxu0 0.0
      %1183 = vmatprep.subr.mxu0 0.0
      %1184 = vmatpush2.xpose.msra.mxu0 0.0
      %1185 = vmatprep.subr.mxu0 0.0
      %1186 = vmatpush2.xpose.msra.mxu0 0.0
      %1187 = vmatprep.subr.mxu0 0.0
      %1188 = vmatpush2.xpose.msra.mxu0 0.0
      %1189 = vmatprep.subr.mxu0 0.0
      %1190 = vmatpush2.xpose.msra.mxu0 0.0
      %1191 = vmatprep.mubr.f32.mxu0 0.0
      %1192 = vmatmul.mubr.f32.gmra.mxu0 %v1119
      %v1193 = vpop.f32.mrf.mxu0
      %v1194 = vadd.f32 0.0, %v1193
      %v1195 = vpop.f32.mrf.mxu0
      %1196 = vmatprep.mubr.f32.mxu0 0.0
      %1197 = vmatmul.mubr.f32.gmra.mxu0 %v1121
      %v1198 = vpop.f32.mrf.mxu0
      %v1199 = vadd.f32 0.0, %v1198
      %v1200 = vpop.f32.mrf.mxu0
      %1201 = vdwg.mxu0
      %v1202 = vsel %vm635, %v1194, -inf
      %1203 = vmax.xlane.f32.xlu0 %v1202
      %v1204 = vpop.xlane.xlu0 %1203
      %v1205 = vsel %vm639, %v1199, -inf
      %1206 = vmax.xlane.f32.xlu0 %v1205
      %v1207 = vpop.xlane.xlu0 %1206
      %v1208 = vsub.f32 %v1194, %v1204
      %v1209 = vsub.f32 %v1199, %v1207
      %v1210 = vmul.f32 %v1208, 1.442695
      %v1211 = vpow.pop %v1210
      %v1212 = vmul.f32 %v1209, 1.442695
      %v1213 = vpow.pop %v1212
      %v1214 = vsel %vm635, %v1211, 0.0
      %1215 = vadd.xlane.f32.xlu0 %v1214
      %v1216 = vpop.xlane.xlu0 %1215
      %v1217 = vsel %vm639, %v1213, 0.0
      %1218 = vadd.xlane.f32.xlu0 %v1217
      %v1219 = vpop.xlane.xlu0 %1218
      %v1220 = vrcp.pop %v1216
      %v1221 = vrcp.pop %v1219
      %v1222 = vmul.f32 %v1211, %v1220
      %v1223 = vmul.f32 %v1213, %v1221
      %1224 = vrot.lane.b32.xlu0 %v528, 48
      %v1225 = vpop.permute.xlu0 %1224
      %1226 = vrot.lane.b32.xlu0 %v533, 48
      %v1227 = vpop.permute.xlu0 %1226
      %v1230 = vsel %vm635, %v1222, 0
      %v1233 = vsel %vm635, %v1223, 0
      %v1235 = vsel %vm670, %v1227, 0
      %1237 = vmatprep.subr.mxu0 0.0
      %1238 = vmatpush1.msra.mxu0 0.0
      %1239 = vmatprep.subr.mxu0 0.0
      %1240 = vmatpush1.msra.mxu0 0.0
      %1241 = vmatprep.subr.mxu0 0.0
      %1242 = vmatpush1.msra.mxu0 0.0
      %1243 = vmatprep.subr.mxu0 0.0
      %1244 = vmatpush1.msra.mxu0 0.0
      %1245 = vmatprep.subr.mxu0 0.0
      %1246 = vmatpush1.msra.mxu0 0.0
      %1247 = vmatprep.subr.mxu0 0.0
      %1248 = vmatpush1.msra.mxu0 0.0
      %1249 = vmatprep.subr.mxu0 0.0
      %1250 = vmatpush1.msra.mxu0 0.0
      %1251 = vmatprep.subr.mxu0 0.0
      %1252 = vmatpush1.msra.mxu0 0.0
      %1253 = vmatprep.subr.mxu0 0.0
      %1254 = vmatpush1.msra.mxu0 0.0
      %1255 = vmatprep.subr.mxu0 0.0
      %1256 = vmatpush1.msra.mxu0 0.0
      %1257 = vmatprep.subr.mxu0 0.0
      %1258 = vmatpush1.msra.mxu0 0.0
      %1259 = vmatprep.subr.mxu0 0.0
      %1260 = vmatpush1.msra.mxu0 0.0
      %1261 = vmatprep.subr.mxu0 0.0
      %1262 = vmatpush1.msra.mxu0 0.0
      %1263 = vmatprep.subr.mxu0 0.0
      %1264 = vmatpush1.msra.mxu0 0.0
      %1265 = vmatprep.subr.mxu0 0.0
      %1266 = vmatpush1.msra.mxu0 %v1235
      %1267 = vmatprep.subr.mxu0 0.0
      %1268 = vmatpush1.msra.mxu0 %v1225
      %1269 = vmatprep.subr.mxu0 0.0
      %1270 = vmatpush2.msra.mxu0 0.0
      %1271 = vmatprep.subr.mxu0 0.0
      %1272 = vmatpush2.msra.mxu0 0.0
      %1273 = vmatprep.subr.mxu0 0.0
      %1274 = vmatpush2.msra.mxu0 0.0
      %1275 = vmatprep.subr.mxu0 0.0
      %1276 = vmatpush2.msra.mxu0 0.0
      %1277 = vmatprep.subr.mxu0 0.0
      %1278 = vmatpush2.msra.mxu0 0.0
      %1279 = vmatprep.subr.mxu0 0.0
      %1280 = vmatpush2.msra.mxu0 0.0
      %1281 = vmatprep.subr.mxu0 0.0
      %1282 = vmatpush2.msra.mxu0 0.0
      %1283 = vmatprep.subr.mxu0 0.0
      %1284 = vmatpush2.msra.mxu0 0.0
      %1285 = vmatprep.subr.mxu0 0.0
      %1286 = vmatpush2.msra.mxu0 0.0
      %1287 = vmatprep.subr.mxu0 0.0
      %1288 = vmatpush2.msra.mxu0 0.0
      %1289 = vmatprep.subr.mxu0 0.0
      %1290 = vmatpush2.msra.mxu0 0.0
      %1291 = vmatprep.subr.mxu0 0.0
      %1292 = vmatpush2.msra.mxu0 0.0
      %1293 = vmatprep.subr.mxu0 0.0
      %1294 = vmatpush2.msra.mxu0 0.0
      %1295 = vmatprep.subr.mxu0 0.0
      %1296 = vmatpush2.msra.mxu0 0.0
      %1297 = vmatprep.subr.mxu0 0.0
      %1298 = vmatpush2.msra.mxu0 0.0
      %1299 = vmatprep.subr.mxu0 0.0
      %1300 = vmatpush2.msra.mxu0 0.0
      %1301 = vmatprep.mubr.f32.mxu0 0.0
      %1302 = vmatmul.mubr.f32.gmra.mxu0 %v1230
      %v1303 = vpop.f32.mrf.mxu0
      %v1304 = vadd.f32 0.0, %v1303
      %v1305 = vpop.f32.mrf.mxu0
      %1306 = vmatprep.mubr.f32.mxu0 0.0
      %1307 = vmatmul.mubr.f32.gmra.mxu0 %v1233
      %v1308 = vpop.f32.mrf.mxu0
      %v1309 = vadd.f32 0.0, %v1308
      %v1310 = vpop.f32.mrf.mxu0
      %1311 = vdwg.mxu0
      %v1313 = vsel %vm549, %v1304, 0
      %v1316 = vsel %vm549, %v1309, 0
      %1318 = vmatprep.subr.mxu0 0.0
      %1319 = vmatpush1.msra.mxu0 0.0
      %1320 = vmatprep.subr.mxu0 0.0
      %1321 = vmatpush1.msra.mxu0 0.0
      %1322 = vmatprep.subr.mxu0 0.0
      %1323 = vmatpush1.msra.mxu0 0.0
      %1324 = vmatprep.subr.mxu0 0.0
      %1325 = vmatpush1.msra.mxu0 0.0
      %1326 = vmatprep.subr.mxu0 0.0
      %1327 = vmatpush1.msra.mxu0 0.0
      %1328 = vmatprep.subr.mxu0 0.0
      %1329 = vmatpush1.msra.mxu0 0.0
      %1330 = vmatprep.subr.mxu0 0.0
      %1331 = vmatpush1.msra.mxu0 0.0
      %1332 = vmatprep.subr.mxu0 0.0
      %1333 = vmatpush1.msra.mxu0 0.0
      %1334 = vmatprep.subr.mxu0 0.0
      %1335 = vmatpush1.msra.mxu0 0.0
      %1336 = vmatprep.subr.mxu0 0.0
      %1337 = vmatpush1.msra.mxu0 0.0
      %1338 = vmatprep.subr.mxu0 0.0
      %1339 = vmatpush1.msra.mxu0 0.0
      %1340 = vmatprep.subr.mxu0 0.0
      %1341 = vmatpush1.msra.mxu0 0.0
      %1342 = vmatprep.subr.mxu0 0.0
      %1343 = vmatpush1.msra.mxu0 0.0
      %1344 = vmatprep.subr.mxu0 0.0
      %1345 = vmatpush1.msra.mxu0 0.0
      %1346 = vmatprep.subr.mxu0 0.0
      %1347 = vmatpush1.msra.mxu0 0.0
      %1348 = vmatprep.subr.mxu0 0.0
      %1349 = vmatpush1.msra.mxu0 %v538
      %1350 = vmatprep.subr.mxu0 0.0
      %1351 = vmatpush2.msra.mxu0 0.0
      %1352 = vmatprep.subr.mxu0 0.0
      %1353 = vmatpush2.msra.mxu0 0.0
      %1354 = vmatprep.subr.mxu0 0.0
      %1355 = vmatpush2.msra.mxu0 0.0
      %1356 = vmatprep.subr.mxu0 0.0
      %1357 = vmatpush2.msra.mxu0 0.0
      %1358 = vmatprep.subr.mxu0 0.0
      %1359 = vmatpush2.msra.mxu0 0.0
      %1360 = vmatprep.subr.mxu0 0.0
      %1361 = vmatpush2.msra.mxu0 0.0
      %1362 = vmatprep.subr.mxu0 0.0
      %1363 = vmatpush2.msra.mxu0 0.0
      %1364 = vmatprep.subr.mxu0 0.0
      %1365 = vmatpush2.msra.mxu0 0.0
      %1366 = vmatprep.subr.mxu0 0.0
      %1367 = vmatpush2.msra.mxu0 0.0
      %1368 = vmatprep.subr.mxu0 0.0
      %1369 = vmatpush2.msra.mxu0 0.0
      %1370 = vmatprep.subr.mxu0 0.0
      %1371 = vmatpush2.msra.mxu0 0.0
      %1372 = vmatprep.subr.mxu0 0.0
      %1373 = vmatpush2.msra.mxu0 0.0
      %1374 = vmatprep.subr.mxu0 0.0
      %1375 = vmatpush2.msra.mxu0 0.0
      %1376 = vmatprep.subr.mxu0 0.0
      %1377 = vmatpush2.msra.mxu0 0.0
      %1378 = vmatprep.subr.mxu0 0.0
      %1379 = vmatpush2.msra.mxu0 0.0
      %1380 = vmatprep.subr.mxu0 0.0
      %1381 = vmatpush2.msra.mxu0 0.0
      %1382 = vmatprep.mubr.f32.mxu0 0.0
      %1383 = vmatmul.mubr.f32.gmra.mxu0 %v1313
      %v1384 = vpop.f32.mrf.mxu0
      %v1385 = vadd.f32 0.0, %v1384
      %v1386 = vpop.f32.mrf.mxu0
      %1387 = vmatprep.mubr.f32.mxu0 0.0
      %1388 = vmatmul.mubr.f32.gmra.mxu0 %v1316
      %v1389 = vpop.f32.mrf.mxu0
      %v1390 = vadd.f32 0.0, %v1389
      %v1391 = vpop.f32.mrf.mxu0
      %1392 = vdwg.mxu0
      %v1393 = vadd.f32 %v1103, %v1385
      %v1394 = vadd.f32 %v1108, %v1390
      %1395 = vrot.lane.b32.xlu0 %v541, 104
      %v1396 = vpop.permute.xlu0 %1395
      %1397 = vrot.lane.b32.xlu0 %v542, 104
      %v1398 = vpop.permute.xlu0 %1397
      %1399 = vrot.lane.b32.xlu0 %v528, 72
      %v1400 = vpop.permute.xlu0 %1399
      %1401 = vrot.lane.b32.xlu0 %v533, 72
      %v1402 = vpop.permute.xlu0 %1401
      %v1403 = vsel %vm549, %v1396, 0
      %v1405 = vsel %vm549, %v1398, 0
      %v1407 = vsel %vm549, %v1400, 0
      %v1409 = vsel %vm549, %v1402, 0
      %1411 = vmatprep.subr.mxu0 0.0
      %1412 = vmatpush1.xpose.msra.mxu0 0.0
      %1413 = vmatprep.subr.mxu0 0.0
      %1414 = vmatpush1.xpose.msra.mxu0 0.0
      %1415 = vmatprep.subr.mxu0 0.0
      %1416 = vmatpush1.xpose.msra.mxu0 0.0
      %1417 = vmatprep.subr.mxu0 0.0
      %1418 = vmatpush1.xpose.msra.mxu0 0.0
      %1419 = vmatprep.subr.mxu0 0.0
      %1420 = vmatpush1.xpose.msra.mxu0 0.0
      %1421 = vmatprep.subr.mxu0 0.0
      %1422 = vmatpush1.xpose.msra.mxu0 0.0
      %1423 = vmatprep.subr.mxu0 0.0
      %1424 = vmatpush1.xpose.msra.mxu0 0.0
      %1425 = vmatprep.subr.mxu0 0.0
      %1426 = vmatpush1.xpose.msra.mxu0 0.0
      %1427 = vmatprep.subr.mxu0 0.0
      %1428 = vmatpush1.xpose.msra.mxu0 0.0
      %1429 = vmatprep.subr.mxu0 0.0
      %1430 = vmatpush1.xpose.msra.mxu0 0.0
      %1431 = vmatprep.subr.mxu0 0.0
      %1432 = vmatpush1.xpose.msra.mxu0 0.0
      %1433 = vmatprep.subr.mxu0 0.0
      %1434 = vmatpush1.xpose.msra.mxu0 0.0
      %1435 = vmatprep.subr.mxu0 0.0
      %1436 = vmatpush1.xpose.msra.mxu0 0.0
      %1437 = vmatprep.subr.mxu0 0.0
      %1438 = vmatpush1.xpose.msra.mxu0 0.0
      %1439 = vmatprep.subr.mxu0 0.0
      %1440 = vmatpush1.xpose.msra.mxu0 %v1409
      %1441 = vmatprep.subr.mxu0 0.0
      %1442 = vmatpush1.xpose.msra.mxu0 %v1407
      %1443 = vmatprep.subr.mxu0 0.0
      %1444 = vmatpush2.xpose.msra.mxu0 0.0
      %1445 = vmatprep.subr.mxu0 0.0
      %1446 = vmatpush2.xpose.msra.mxu0 0.0
      %1447 = vmatprep.subr.mxu0 0.0
      %1448 = vmatpush2.xpose.msra.mxu0 0.0
      %1449 = vmatprep.subr.mxu0 0.0
      %1450 = vmatpush2.xpose.msra.mxu0 0.0
      %1451 = vmatprep.subr.mxu0 0.0
      %1452 = vmatpush2.xpose.msra.mxu0 0.0
      %1453 = vmatprep.subr.mxu0 0.0
      %1454 = vmatpush2.xpose.msra.mxu0 0.0
      %1455 = vmatprep.subr.mxu0 0.0
      %1456 = vmatpush2.xpose.msra.mxu0 0.0
      %1457 = vmatprep.subr.mxu0 0.0
      %1458 = vmatpush2.xpose.msra.mxu0 0.0
      %1459 = vmatprep.subr.mxu0 0.0
      %1460 = vmatpush2.xpose.msra.mxu0 0.0
      %1461 = vmatprep.subr.mxu0 0.0
      %1462 = vmatpush2.xpose.msra.mxu0 0.0
      %1463 = vmatprep.subr.mxu0 0.0
      %1464 = vmatpush2.xpose.msra.mxu0 0.0
      %1465 = vmatprep.subr.mxu0 0.0
      %1466 = vmatpush2.xpose.msra.mxu0 0.0
      %1467 = vmatprep.subr.mxu0 0.0
      %1468 = vmatpush2.xpose.msra.mxu0 0.0
      %1469 = vmatprep.subr.mxu0 0.0
      %1470 = vmatpush2.xpose.msra.mxu0 0.0
      %1471 = vmatprep.subr.mxu0 0.0
      %1472 = vmatpush2.xpose.msra.mxu0 0.0
      %1473 = vmatprep.subr.mxu0 0.0
      %1474 = vmatpush2.xpose.msra.mxu0 0.0
      %1475 = vmatprep.mubr.f32.mxu0 0.0
      %1476 = vmatmul.mubr.f32.gmra.mxu0 %v1403
      %v1477 = vpop.f32.mrf.mxu0
      %v1478 = vadd.f32 0.0, %v1477
      %v1479 = vpop.f32.mrf.mxu0
      %1480 = vmatprep.mubr.f32.mxu0 0.0
      %1481 = vmatmul.mubr.f32.gmra.mxu0 %v1405
      %v1482 = vpop.f32.mrf.mxu0
      %v1483 = vadd.f32 0.0, %v1482
      %v1484 = vpop.f32.mrf.mxu0
      %1485 = vdwg.mxu0
      %v1486 = vsel %vm635, %v1478, -inf
      %1487 = vmax.xlane.f32.xlu0 %v1486
      %v1488 = vpop.xlane.xlu0 %1487
      %v1489 = vsel %vm639, %v1483, -inf
      %1490 = vmax.xlane.f32.xlu0 %v1489
      %v1491 = vpop.xlane.xlu0 %1490
      %v1492 = vsub.f32 %v1478, %v1488
      %v1493 = vsub.f32 %v1483, %v1491
      %v1494 = vmul.f32 %v1492, 1.442695
      %v1495 = vpow.pop %v1494
      %v1496 = vmul.f32 %v1493, 1.442695
      %v1497 = vpow.pop %v1496
      %v1498 = vsel %vm635, %v1495, 0.0
      %1499 = vadd.xlane.f32.xlu0 %v1498
      %v1500 = vpop.xlane.xlu0 %1499
      %v1501 = vsel %vm639, %v1497, 0.0
      %1502 = vadd.xlane.f32.xlu0 %v1501
      %v1503 = vpop.xlane.xlu0 %1502
      %v1504 = vrcp.pop %v1500
      %v1505 = vrcp.pop %v1503
      %v1506 = vmul.f32 %v1495, %v1504
      %v1507 = vmul.f32 %v1497, %v1505
      %1508 = vrot.lane.b32.xlu0 %v528, 40
      %v1509 = vpop.permute.xlu0 %1508
      %1510 = vrot.lane.b32.xlu0 %v533, 40
      %v1511 = vpop.permute.xlu0 %1510
      %v1514 = vsel %vm635, %v1506, 0
      %v1517 = vsel %vm635, %v1507, 0
      %v1519 = vsel %vm670, %v1511, 0
      %1521 = vmatprep.subr.mxu0 0.0
      %1522 = vmatpush1.msra.mxu0 0.0
      %1523 = vmatprep.subr.mxu0 0.0
      %1524 = vmatpush1.msra.mxu0 0.0
      %1525 = vmatprep.subr.mxu0 0.0
      %1526 = vmatpush1.msra.mxu0 0.0
      %1527 = vmatprep.subr.mxu0 0.0
      %1528 = vmatpush1.msra.mxu0 0.0
      %1529 = vmatprep.subr.mxu0 0.0
      %1530 = vmatpush1.msra.mxu0 0.0
      %1531 = vmatprep.subr.mxu0 0.0
      %1532 = vmatpush1.msra.mxu0 0.0
      %1533 = vmatprep.subr.mxu0 0.0
      %1534 = vmatpush1.msra.mxu0 0.0
      %1535 = vmatprep.subr.mxu0 0.0
      %1536 = vmatpush1.msra.mxu0 0.0
      %1537 = vmatprep.subr.mxu0 0.0
      %1538 = vmatpush1.msra.mxu0 0.0
      %1539 = vmatprep.subr.mxu0 0.0
      %1540 = vmatpush1.msra.mxu0 0.0
      %1541 = vmatprep.subr.mxu0 0.0
      %1542 = vmatpush1.msra.mxu0 0.0
      %1543 = vmatprep.subr.mxu0 0.0
      %1544 = vmatpush1.msra.mxu0 0.0
      %1545 = vmatprep.subr.mxu0 0.0
      %1546 = vmatpush1.msra.mxu0 0.0
      %1547 = vmatprep.subr.mxu0 0.0
      %1548 = vmatpush1.msra.mxu0 0.0
      %1549 = vmatprep.subr.mxu0 0.0
      %1550 = vmatpush1.msra.mxu0 %v1519
      %1551 = vmatprep.subr.mxu0 0.0
      %1552 = vmatpush1.msra.mxu0 %v1509
      %1553 = vmatprep.subr.mxu0 0.0
      %1554 = vmatpush2.msra.mxu0 0.0
      %1555 = vmatprep.subr.mxu0 0.0
      %1556 = vmatpush2.msra.mxu0 0.0
      %1557 = vmatprep.subr.mxu0 0.0
      %1558 = vmatpush2.msra.mxu0 0.0
      %1559 = vmatprep.subr.mxu0 0.0
      %1560 = vmatpush2.msra.mxu0 0.0
      %1561 = vmatprep.subr.mxu0 0.0
      %1562 = vmatpush2.msra.mxu0 0.0
      %1563 = vmatprep.subr.mxu0 0.0
      %1564 = vmatpush2.msra.mxu0 0.0
      %1565 = vmatprep.subr.mxu0 0.0
      %1566 = vmatpush2.msra.mxu0 0.0
      %1567 = vmatprep.subr.mxu0 0.0
      %1568 = vmatpush2.msra.mxu0 0.0
      %1569 = vmatprep.subr.mxu0 0.0
      %1570 = vmatpush2.msra.mxu0 0.0
      %1571 = vmatprep.subr.mxu0 0.0
      %1572 = vmatpush2.msra.mxu0 0.0
      %1573 = vmatprep.subr.mxu0 0.0
      %1574 = vmatpush2.msra.mxu0 0.0
      %1575 = vmatprep.subr.mxu0 0.0
      %1576 = vmatpush2.msra.mxu0 0.0
      %1577 = vmatprep.subr.mxu0 0.0
      %1578 = vmatpush2.msra.mxu0 0.0
      %1579 = vmatprep.subr.mxu0 0.0
      %1580 = vmatpush2.msra.mxu0 0.0
      %1581 = vmatprep.subr.mxu0 0.0
      %1582 = vmatpush2.msra.mxu0 0.0
      %1583 = vmatprep.subr.mxu0 0.0
      %1584 = vmatpush2.msra.mxu0 0.0
      %1585 = vmatprep.mubr.f32.mxu0 0.0
      %1586 = vmatmul.mubr.f32.gmra.mxu0 %v1514
      %v1587 = vpop.f32.mrf.mxu0
      %v1588 = vadd.f32 0.0, %v1587
      %v1589 = vpop.f32.mrf.mxu0
      %1590 = vmatprep.mubr.f32.mxu0 0.0
      %1591 = vmatmul.mubr.f32.gmra.mxu0 %v1517
      %v1592 = vpop.f32.mrf.mxu0
      %v1593 = vadd.f32 0.0, %v1592
      %v1594 = vpop.f32.mrf.mxu0
      %1595 = vdwg.mxu0
      %v1597 = vsel %vm549, %v1588, 0
      %v1600 = vsel %vm549, %v1593, 0
      %1602 = vmatprep.subr.mxu0 0.0
      %1603 = vmatpush1.msra.mxu0 0.0
      %1604 = vmatprep.subr.mxu0 0.0
      %1605 = vmatpush1.msra.mxu0 0.0
      %1606 = vmatprep.subr.mxu0 0.0
      %1607 = vmatpush1.msra.mxu0 0.0
      %1608 = vmatprep.subr.mxu0 0.0
      %1609 = vmatpush1.msra.mxu0 0.0
      %1610 = vmatprep.subr.mxu0 0.0
      %1611 = vmatpush1.msra.mxu0 0.0
      %1612 = vmatprep.subr.mxu0 0.0
      %1613 = vmatpush1.msra.mxu0 0.0
      %1614 = vmatprep.subr.mxu0 0.0
      %1615 = vmatpush1.msra.mxu0 0.0
      %1616 = vmatprep.subr.mxu0 0.0
      %1617 = vmatpush1.msra.mxu0 0.0
      %1618 = vmatprep.subr.mxu0 0.0
      %1619 = vmatpush1.msra.mxu0 0.0
      %1620 = vmatprep.subr.mxu0 0.0
      %1621 = vmatpush1.msra.mxu0 0.0
      %1622 = vmatprep.subr.mxu0 0.0
      %1623 = vmatpush1.msra.mxu0 0.0
      %1624 = vmatprep.subr.mxu0 0.0
      %1625 = vmatpush1.msra.mxu0 0.0
      %1626 = vmatprep.subr.mxu0 0.0
      %1627 = vmatpush1.msra.mxu0 0.0
      %1628 = vmatprep.subr.mxu0 0.0
      %1629 = vmatpush1.msra.mxu0 0.0
      %1630 = vmatprep.subr.mxu0 0.0
      %1631 = vmatpush1.msra.mxu0 0.0
      %1632 = vmatprep.subr.mxu0 0.0
      %1633 = vmatpush1.msra.mxu0 %v539
      %1634 = vmatprep.subr.mxu0 0.0
      %1635 = vmatpush2.msra.mxu0 0.0
      %1636 = vmatprep.subr.mxu0 0.0
      %1637 = vmatpush2.msra.mxu0 0.0
      %1638 = vmatprep.subr.mxu0 0.0
      %1639 = vmatpush2.msra.mxu0 0.0
      %1640 = vmatprep.subr.mxu0 0.0
      %1641 = vmatpush2.msra.mxu0 0.0
      %1642 = vmatprep.subr.mxu0 0.0
      %1643 = vmatpush2.msra.mxu0 0.0
      %1644 = vmatprep.subr.mxu0 0.0
      %1645 = vmatpush2.msra.mxu0 0.0
      %1646 = vmatprep.subr.mxu0 0.0
      %1647 = vmatpush2.msra.mxu0 0.0
      %1648 = vmatprep.subr.mxu0 0.0
      %1649 = vmatpush2.msra.mxu0 0.0
      %1650 = vmatprep.subr.mxu0 0.0
      %1651 = vmatpush2.msra.mxu0 0.0
      %1652 = vmatprep.subr.mxu0 0.0
      %1653 = vmatpush2.msra.mxu0 0.0
      %1654 = vmatprep.subr.mxu0 0.0
      %1655 = vmatpush2.msra.mxu0 0.0
      %1656 = vmatprep.subr.mxu0 0.0
      %1657 = vmatpush2.msra.mxu0 0.0
      %1658 = vmatprep.subr.mxu0 0.0
      %1659 = vmatpush2.msra.mxu0 0.0
      %1660 = vmatprep.subr.mxu0 0.0
      %1661 = vmatpush2.msra.mxu0 0.0
      %1662 = vmatprep.subr.mxu0 0.0
      %1663 = vmatpush2.msra.mxu0 0.0
      %1664 = vmatprep.subr.mxu0 0.0
      %1665 = vmatpush2.msra.mxu0 0.0
      %1666 = vmatprep.mubr.f32.mxu0 0.0
      %1667 = vmatmul.mubr.f32.gmra.mxu0 %v1597
      %v1668 = vpop.f32.mrf.mxu0
      %v1669 = vadd.f32 0.0, %v1668
      %v1670 = vpop.f32.mrf.mxu0
      %1671 = vmatprep.mubr.f32.mxu0 0.0
      %1672 = vmatmul.mubr.f32.gmra.mxu0 %v1600
      %v1673 = vpop.f32.mrf.mxu0
      %v1674 = vadd.f32 0.0, %v1673
      %v1675 = vpop.f32.mrf.mxu0
      %1676 = vdwg.mxu0
      %v1677 = vadd.f32 %v1393, %v1669
      %v1678 = vadd.f32 %v1394, %v1674
      %v1680 = vlaneseq
      %v1681 = vshrl.u32 %v1680, 7
      %v1682 = vsub.s32 0, %v1681
      %v1683 = vrot.slane %v540, %v1682
      %v1685 = vadd.f32 %v1677, %v1683
      %v1686 = vadd.f32 %v1678, %v1683
      %v1687 = vadd.f32 %v441, %v1685
      %v1688 = vadd.f32 %v442, %v1686
      %v1689 = vld [vmem:[%s5] sm:$0x1]
      %v1690 = vld [vmem:[%s6] sm:$0x1]
      %v1691 = vsel %vm454, %v1687, 0.0
      %1692 = vadd.xlane.f32.xlu0 %v1691
      %v1693 = vpop.xlane.xlu0 %1692
      %vm1694 = vcmask 254976
      %v1695 = vsel %vm1694, %v1688, 0.0
      %1696 = vadd.xlane.f32.xlu0 %v1695
      %v1697 = vpop.xlane.xlu0 %1696
      %v1698 = vrcp.pop 32.0
      %v1699 = vmul.f32 %v1693, %v1698
      %v1700 = vmul.f32 %v1697, %v1698
      %v1701 = vsub.f32 %v1687, %v1699
      %v1702 = vsub.f32 %v1688, %v1700
      %v1703 = vmul.f32 %v1701, %v1701
      %v1704 = vmul.f32 %v1702, %v1702
      %v1705 = vsel %vm454, %v1703, 0.0
      %1706 = vadd.xlane.f32.xlu0 %v1705
      %v1707 = vpop.xlane.xlu0 %1706
      %v1708 = vsel %vm1694, %v1704, 0.0
      %1709 = vadd.xlane.f32.xlu0 %v1708
      %v1710 = vpop.xlane.xlu0 %1709
      %v1711 = vmul.f32 %v1707, %v1698
      %v1712 = vmul.f32 %v1710, %v1698
      %v1713 = vadd.f32 %v1711, 1e-05
      %v1714 = vadd.f32 %v1712, 1e-05
      %v1715 = vrsqrt.pop %v1713
      %v1716 = vrsqrt.pop %v1714
      %v1717 = vmul.f32 %v1701, %v1715
      %v1718 = vmul.f32 %v1702, %v1716
      %v1720 = vlaneseq
      %v1721 = vshrl.u32 %v1720, 7
      %v1722 = vsub.s32 0, %v1721
      %v1723 = vrot.slane %v1689, %v1722
      %v1725 = vmul.f32 %v1717, %v1723
      %v1726 = vmul.f32 %v1718, %v1723
      %v1728 = vlaneseq
      %v1729 = vshrl.u32 %v1728, 7
      %v1730 = vsub.s32 0, %v1729
      %v1731 = vrot.slane %v1690, %v1730
      %v1733 = vadd.f32 %v1725, %v1731
      %v1734 = vadd.f32 %v1726, %v1731
      %v1735 = vld [vmem:[%s7] sm:$0xff]
      %v1736 = vld [vmem:[%s7 + $0x8] sm:$0xff]
      %v1737 = vld [vmem:[%s7 + $0x10] sm:$0xff]
      %v1738 = vld [vmem:[%s7 + $0x18] sm:$0xff]
      %v1739 = vld [vmem:[%s8] sm:$0x1]
      %v1740 = vld [vmem:[%s9] sm:$0xff]
      %v1741 = vld [vmem:[%s9 + $0x8] sm:$0xff]
      %v1742 = vld [vmem:[%s9 + $0x10] sm:$0xff]
      %v1743 = vld [vmem:[%s9 + $0x18] sm:$0xff]
      %v1744 = vld [vmem:[%s9 + $0x20] sm:$0xff]
      %v1745 = vld [vmem:[%s9 + $0x28] sm:$0xff]
      %v1746 = vld [vmem:[%s9 + $0x30] sm:$0xff]
      %v1747 = vld [vmem:[%s9 + $0x38] sm:$0xff]
      %v1748 = vld [vmem:[%s10] sm:$0x1]
      %v1750 = vlaneseq
      %v1751 = vshrl.u32 %v1750, 7
      %v1752 = vsub.s32 0, %v1751
      %v1753 = vrot.slane %v1739, %v1752
      %v1756 = vsel %vm454, %v1733, 0
      %v1759 = vsel %vm454, %v1734, 0
      %1761 = vmatprep.subr.mxu0 0.0
      %1762 = vmatpush1.msra.mxu0 0.0
      %1763 = vmatprep.subr.mxu0 0.0
      %1764 = vmatpush1.msra.mxu0 0.0
      %1765 = vmatprep.subr.mxu0 0.0
      %1766 = vmatpush1.msra.mxu0 0.0
      %1767 = vmatprep.subr.mxu0 0.0
      %1768 = vmatpush1.msra.mxu0 0.0
      %1769 = vmatprep.subr.mxu0 0.0
      %1770 = vmatpush1.msra.mxu0 0.0
      %1771 = vmatprep.subr.mxu0 0.0
      %1772 = vmatpush1.msra.mxu0 0.0
      %1773 = vmatprep.subr.mxu0 0.0
      %1774 = vmatpush1.msra.mxu0 0.0
      %1775 = vmatprep.subr.mxu0 0.0
      %1776 = vmatpush1.msra.mxu0 0.0
      %1777 = vmatprep.subr.mxu0 0.0
      %1778 = vmatpush1.msra.mxu0 0.0
      %1779 = vmatprep.subr.mxu0 0.0
      %1780 = vmatpush1.msra.mxu0 0.0
      %1781 = vmatprep.subr.mxu0 0.0
      %1782 = vmatpush1.msra.mxu0 0.0
      %1783 = vmatprep.subr.mxu0 0.0
      %1784 = vmatpush1.msra.mxu0 0.0
      %1785 = vmatprep.subr.mxu0 0.0
      %1786 = vmatpush1.msra.mxu0 %v1738
      %1787 = vmatprep.subr.mxu0 0.0
      %1788 = vmatpush1.msra.mxu0 %v1737
      %1789 = vmatprep.subr.mxu0 0.0
      %1790 = vmatpush1.msra.mxu0 %v1736
      %1791 = vmatprep.subr.mxu0 0.0
      %1792 = vmatpush1.msra.mxu0 %v1735
      %1793 = vmatprep.subr.mxu0 0.0
      %1794 = vmatpush2.msra.mxu0 0.0
      %1795 = vmatprep.subr.mxu0 0.0
      %1796 = vmatpush2.msra.mxu0 0.0
      %1797 = vmatprep.subr.mxu0 0.0
      %1798 = vmatpush2.msra.mxu0 0.0
      %1799 = vmatprep.subr.mxu0 0.0
      %1800 = vmatpush2.msra.mxu0 0.0
      %1801 = vmatprep.subr.mxu0 0.0
      %1802 = vmatpush2.msra.mxu0 0.0
      %1803 = vmatprep.subr.mxu0 0.0
      %1804 = vmatpush2.msra.mxu0 0.0
      %1805 = vmatprep.subr.mxu0 0.0
      %1806 = vmatpush2.msra.mxu0 0.0
      %1807 = vmatprep.subr.mxu0 0.0
      %1808 = vmatpush2.msra.mxu0 0.0
      %1809 = vmatprep.subr.mxu0 0.0
      %1810 = vmatpush2.msra.mxu0 0.0
      %1811 = vmatprep.subr.mxu0 0.0
      %1812 = vmatpush2.msra.mxu0 0.0
      %1813 = vmatprep.subr.mxu0 0.0
      %1814 = vmatpush2.msra.mxu0 0.0
      %1815 = vmatprep.subr.mxu0 0.0
      %1816 = vmatpush2.msra.mxu0 0.0
      %1817 = vmatprep.subr.mxu0 0.0
      %1818 = vmatpush2.msra.mxu0 0.0
      %1819 = vmatprep.subr.mxu0 0.0
      %1820 = vmatpush2.msra.mxu0 0.0
      %1821 = vmatprep.subr.mxu0 0.0
      %1822 = vmatpush2.msra.mxu0 0.0
      %1823 = vmatprep.subr.mxu0 0.0
      %1824 = vmatpush2.msra.mxu0 0.0
      %1825 = vmatprep.mubr.f32.mxu0 0.0
      %1826 = vmatmul.mubr.f32.gmra.mxu0 %v1756
      %v1827 = vpop.f32.mrf.mxu0
      %v1828 = vadd.f32 %v1753, %v1827
      %v1829 = vpop.f32.mrf.mxu0
      %1830 = vmatprep.mubr.f32.mxu0 0.0
      %1831 = vmatmul.mubr.f32.gmra.mxu0 %v1759
      %v1832 = vpop.f32.mrf.mxu0
      %v1833 = vadd.f32 %v1753, %v1832
      %v1834 = vpop.f32.mrf.mxu0
      %1835 = vdwg.mxu0
      %v1836 = vmax.f32 %v1828, 0.0
      %v1837 = vmax.f32 %v1833, 0.0
      %v1839 = vlaneseq
      %v1840 = vshrl.u32 %v1839, 7
      %v1841 = vsub.s32 0, %v1840
      %v1842 = vrot.slane %v1748, %v1841
      %vm1844 = vcmask 523264
      %v1846 = vsel %vm1844, %v1836, 0
      %v1849 = vsel %vm1844, %v1837, 0
      %1851 = vmatprep.subr.mxu0 0.0
      %1852 = vmatpush1.msra.mxu0 0.0
      %1853 = vmatprep.subr.mxu0 0.0
      %1854 = vmatpush1.msra.mxu0 0.0
      %1855 = vmatprep.subr.mxu0 0.0
      %1856 = vmatpush1.msra.mxu0 0.0
      %1857 = vmatprep.subr.mxu0 0.0
      %1858 = vmatpush1.msra.mxu0 0.0
      %1859 = vmatprep.subr.mxu0 0.0
      %1860 = vmatpush1.msra.mxu0 0.0
      %1861 = vmatprep.subr.mxu0 0.0
      %1862 = vmatpush1.msra.mxu0 0.0
      %1863 = vmatprep.subr.mxu0 0.0
      %1864 = vmatpush1.msra.mxu0 0.0
      %1865 = vmatprep.subr.mxu0 0.0
      %1866 = vmatpush1.msra.mxu0 0.0
      %1867 = vmatprep.subr.mxu0 0.0
      %1868 = vmatpush1.msra.mxu0 %v1747
      %1869 = vmatprep.subr.mxu0 0.0
      %1870 = vmatpush1.msra.mxu0 %v1746
      %1871 = vmatprep.subr.mxu0 0.0
      %1872 = vmatpush1.msra.mxu0 %v1745
      %1873 = vmatprep.subr.mxu0 0.0
      %1874 = vmatpush1.msra.mxu0 %v1744
      %1875 = vmatprep.subr.mxu0 0.0
      %1876 = vmatpush1.msra.mxu0 %v1743
      %1877 = vmatprep.subr.mxu0 0.0
      %1878 = vmatpush1.msra.mxu0 %v1742
      %1879 = vmatprep.subr.mxu0 0.0
      %1880 = vmatpush1.msra.mxu0 %v1741
      %1881 = vmatprep.subr.mxu0 0.0
      %1882 = vmatpush1.msra.mxu0 %v1740
      %1883 = vmatprep.subr.mxu0 0.0
      %1884 = vmatpush2.msra.mxu0 0.0
      %1885 = vmatprep.subr.mxu0 0.0
      %1886 = vmatpush2.msra.mxu0 0.0
      %1887 = vmatprep.subr.mxu0 0.0
      %1888 = vmatpush2.msra.mxu0 0.0
      %1889 = vmatprep.subr.mxu0 0.0
      %1890 = vmatpush2.msra.mxu0 0.0
      %1891 = vmatprep.subr.mxu0 0.0
      %1892 = vmatpush2.msra.mxu0 0.0
      %1893 = vmatprep.subr.mxu0 0.0
      %1894 = vmatpush2.msra.mxu0 0.0
      %1895 = vmatprep.subr.mxu0 0.0
      %1896 = vmatpush2.msra.mxu0 0.0
      %1897 = vmatprep.subr.mxu0 0.0
      %1898 = vmatpush2.msra.mxu0 0.0
      %1899 = vmatprep.subr.mxu0 0.0
      %1900 = vmatpush2.msra.mxu0 0.0
      %1901 = vmatprep.subr.mxu0 0.0
      %1902 = vmatpush2.msra.mxu0 0.0
      %1903 = vmatprep.subr.mxu0 0.0
      %1904 = vmatpush2.msra.mxu0 0.0
      %1905 = vmatprep.subr.mxu0 0.0
      %1906 = vmatpush2.msra.mxu0 0.0
      %1907 = vmatprep.subr.mxu0 0.0
      %1908 = vmatpush2.msra.mxu0 0.0
      %1909 = vmatprep.subr.mxu0 0.0
      %1910 = vmatpush2.msra.mxu0 0.0
      %1911 = vmatprep.subr.mxu0 0.0
      %1912 = vmatpush2.msra.mxu0 0.0
      %1913 = vmatprep.subr.mxu0 0.0
      %1914 = vmatpush2.msra.mxu0 0.0
      %1915 = vmatprep.mubr.f32.mxu0 0.0
      %1916 = vmatmul.mubr.f32.gmra.mxu0 %v1846
      %v1917 = vpop.f32.mrf.mxu0
      %v1918 = vadd.f32 %v1842, %v1917
      %v1919 = vpop.f32.mrf.mxu0
      %1920 = vmatprep.mubr.f32.mxu0 0.0
      %1921 = vmatmul.mubr.f32.gmra.mxu0 %v1849
      %v1922 = vpop.f32.mrf.mxu0
      %v1923 = vadd.f32 %v1842, %v1922
      %v1924 = vpop.f32.mrf.mxu0
      %1925 = vdwg.mxu0
      %v1926 = vadd.f32 %v1733, %v1918
      %v1927 = vadd.f32 %v1734, %v1923
      %v1928 = vld [vmem:[%s11] sm:$0x1]
      %v1929 = vld [vmem:[%s12] sm:$0x1]
      %v1930 = vsel %vm454, %v1926, 0.0
      %1931 = vadd.xlane.f32.xlu0 %v1930
      %v1932 = vpop.xlane.xlu0 %1931
      %v1933 = vsel %vm1694, %v1927, 0.0
      %1934 = vadd.xlane.f32.xlu0 %v1933
      %v1935 = vpop.xlane.xlu0 %1934
      %v1936 = vmul.f32 %v1932, %v1698
      %v1937 = vmul.f32 %v1935, %v1698
      %v1938 = vsub.f32 %v1926, %v1936
      %v1939 = vsub.f32 %v1927, %v1937
      %v1940 = vmul.f32 %v1938, %v1938
      %v1941 = vmul.f32 %v1939, %v1939
      %v1942 = vsel %vm454, %v1940, 0.0
      %1943 = vadd.xlane.f32.xlu0 %v1942
      %v1944 = vpop.xlane.xlu0 %1943
      %v1945 = vsel %vm1694, %v1941, 0.0
      %1946 = vadd.xlane.f32.xlu0 %v1945
      %v1947 = vpop.xlane.xlu0 %1946
      %v1948 = vmul.f32 %v1944, %v1698
      %v1949 = vmul.f32 %v1947, %v1698
      %v1950 = vadd.f32 %v1948, 1e-05
      %v1951 = vadd.f32 %v1949, 1e-05
      %v1952 = vrsqrt.pop %v1950
      %v1953 = vrsqrt.pop %v1951
      %v1954 = vmul.f32 %v1938, %v1952
      %v1955 = vmul.f32 %v1939, %v1953
      %v1957 = vlaneseq
      %v1958 = vshrl.u32 %v1957, 7
      %v1959 = vsub.s32 0, %v1958
      %v1960 = vrot.slane %v1928, %v1959
      %v1962 = vmul.f32 %v1954, %v1960
      %v1963 = vmul.f32 %v1955, %v1960
      %v1965 = vlaneseq
      %v1966 = vshrl.u32 %v1965, 7
      %v1967 = vsub.s32 0, %v1966
      %v1968 = vrot.slane %v1929, %v1967
      %v1970 = vadd.f32 %v1962, %v1968
      %v1971 = vadd.f32 %v1963, %v1968
      %1972 = vst.msk [vmem:[%s440] sm:$0xff] %vm454, %v1970
      %1973 = vst.msk [vmem:[%s440 + $0x8] sm:$0x3] %vm1694, %v1971
      %p1974 = scmp.lt.s32.totalorder %s24, 1
      %s1975 = scalar_select %p1974, %s24, 1
      %s1976 = smul.addr %s1975, 2
      %s1977 = smul.addr %s1976, 8
      %s1978 = scalar_lea.vmem %s13, %s1977
      // Predicated region
      $region73: #{tpu_custom_call.1} parent=71 // pred_check
        %p1979 = pneg %p320
      $region74: #{tpu_custom_call.1} parent=71 // pred_check_branch
        %1981 = sbr.rel (%p1979) target = $region76
      $region75: #{tpu_custom_call.1} parent=71 // pred_region
        _
      $region76: #{tpu_custom_call.1} parent=71 // pred_fallthru
        _
    $region72: #{tpu_custom_call.1} parent=5 // pred_fallthru
      _
    %p1982 = scmp.le.s32.totalorder 2, %s19
    // Predicated region
    $region77: #{tpu_custom_call.1} parent=5 // pred_check
      %p1983 = pneg %p1982
    $region78: #{tpu_custom_call.1} parent=5 // pred_check_branch
      %1985 = sbr.rel (%p1983) target = $region80
    $region79: #{tpu_custom_call.1} parent=5 // pred_region
      %s1986 = ssub.s32 %s19, 2
      // Predicated region
      $region81: #{tpu_custom_call.1} parent=79 // pred_check
        %p1987 = pneg %p326
      $region82: #{tpu_custom_call.1} parent=79 // pred_check_branch
        %1989 = sbr.rel (%p1987) target = $region84
      $region83: #{tpu_custom_call.1} parent=79 // pred_region
        %p1990 = scmp.lt.s32.totalorder %s25, 1
        %s1991 = scalar_select %p1990, %s25, 1
        %s1992 = smul.addr %s1991, 2
        %s1993 = smul.addr %s1992, 8
        %s1994 = scalar_lea.vmem %s13, %s1993
      $region84: #{tpu_custom_call.1} parent=79 // pred_fallthru
        _
    $region80: #{tpu_custom_call.1} parent=5 // pred_fallthru
      _
  $region6: #{tpu_custom_call.1} parent=0 // loop_footer
    %s23 = sadd.s32 1, %s19
  $region7: #{tpu_custom_call.1} parent=0 // loop_footer_branch
    %18 = sbr.rel target = $region3
  $region8: #{tpu_custom_call.1} parent=0 // loop_exit
    _

</llo_original>
